<compile_context>
chip_gen: v7x
topology: tpu7x:2x2x1
jax: 0.10.0
libtpu: 0.0.40
codegen_flags: <defaults>
</compile_context>

<pallas_src>
import jax
import jax.numpy as jnp
from jax.experimental import pallas as pl
from jax.experimental.pallas import tpu as pltpu


def _round_up(n, m):
    return ((n + m - 1) // m) * m


def _pad2(a, rows, cols):
    """Zero-pad a 2-D array to (rows, cols); returns `a` unchanged if already that shape."""
    r, c = a.shape
    if r == rows and c == cols:
        return a
    return jnp.zeros((rows, cols), a.dtype).at[:r, :c].set(a)


def _autoencoder_kernel(x_ref, we_ref, be_ref, wd_ref, bd_ref, o_ref):
    # ----- encoder: Linear + ReLU (MXU matmul + VPU elementwise) -----
    x = x_ref[...]                                                    # (TB, D_in_p) f32
    z = jnp.dot(x, we_ref[...], preferred_element_type=jnp.float32,
                precision=jax.lax.Precision.HIGHEST)                  # (TB, D_hid_p)
    z = jnp.maximum(z + be_ref[...], 0.0)                             # bias bcast + ReLU

    # ----- decoder: Linear + Sigmoid -----
    y = jnp.dot(z, wd_ref[...], preferred_element_type=jnp.float32,
                precision=jax.lax.Precision.HIGHEST)                  # (TB, D_in_p)
    y = y + bd_ref[...]
    # sigmoid(y) == 0.5*tanh(0.5*y) + 0.5 : one EUP transcendental per element
    # (instead of exp + divide), exact identity so tolerance is preserved.
    o_ref[...] = (0.5 * jnp.tanh(0.5 * y) + 0.5).astype(o_ref.dtype)


def prepare_autoencoder_params(w_enc, b_enc, w_dec, b_dec):
    """Pad parameters to 128-lane multiples ONCE (no-op when already aligned).

    Weights are expected pre-transposed to (in_features, out_features), so the
    kernel computes x @ W + b (equivalent to PyTorch's x @ W.T + b).
    Zero padding is exact: padded encoder cols give ReLU(0)=0 and padded decoder
    rows are zero, so padded lanes contribute nothing.
    """
    D_in, D_hid = w_enc.shape
    D_in_p = _round_up(D_in, 128)
    D_hid_p = _round_up(D_hid, 128)
    f32 = jnp.float32
    we = _pad2(w_enc.astype(f32), D_in_p, D_hid_p)
    be = _pad2(b_enc.astype(f32).reshape(1, -1), 1, D_hid_p)
    wd = _pad2(w_dec.astype(f32), D_hid_p, D_in_p)
    bd = _pad2(b_dec.astype(f32).reshape(1, -1), 1, D_in_p)
    return (we, be, wd, bd, D_in)


def _pick_batch_tile(B, D_in_p, D_hid_p, tb_max, vmem_budget_bytes):
    """Largest batch tile (multiple of 8 rows) that fits the VMEM budget,
    capped so the batch grid has >= 2 tiles (v7x megacore) when B allows it."""
    # Resident weights/biases, conservatively counted double-buffered.
    fixed = 8 * (2 * D_in_p * D_hid_p + D_hid_p + D_in_p)
    # Per-row bytes: x + out tiles double-buffered, plus z and y temporaries.
    per_row = 4 * (2 * 2 * D_in_p + D_hid_p + D_in_p)
    fit = max(8, (vmem_budget_bytes - fixed) // per_row)
    tb = min(tb_max, fit)
    half = _round_up(pl.cdiv(B, 2), 8)        # aim for >= 2 tiles across TCs
    tb = min(tb, half)
    return max(8, (tb // 8) * 8)


def autoencoder_forward(x, params, *, tb_max=2048, vmem_limit_bytes=32 * 1024 * 1024):
    """x: (B, D_in); params from prepare_autoencoder_params."""
    we, be, wd, bd, d_in = params
    B, D_in = x.shape
    assert D_in == d_in, "input feature dim does not match prepared params"
    D_in_p, D_hid_p = we.shape

    # Pad x columns only when the feature dim is not 128-aligned (avoids an
    # extra HBM read+write pass over x in the common aligned case).
    xp = x if D_in_p == D_in else _pad2(x, B, D_in_p)

    # Batch tiling: no batch padding; grid = cdiv and the partial last block is
    # masked by Pallas (rows are independent). Tiles < 8 rows only when B < 8,
    # where a full-batch block is legal.
    if B < 8:
        TB = B
    else:
        TB = _pick_batch_tile(B, D_in_p, D_hid_p, tb_max,
                              int(vmem_limit_bytes * 0.75))
    grid = (pl.cdiv(B, TB),)

    elem_bytes = 4
    cost = pl.CostEstimate(
        flops=4 * B * D_in_p * D_hid_p,            # two matmuls, 2*M*N*K each
        transcendentals=B * D_in_p,                # one tanh per output element
        bytes_accessed=(2 * B * D_in_p + we.size + be.size + wd.size + bd.size)
                       * elem_bytes,
    )

    out = pl.pallas_call(
        _autoencoder_kernel,
        out_shape=jax.ShapeDtypeStruct((B, D_in_p), x.dtype),
        grid=grid,
        in_specs=[
            pl.BlockSpec((TB, D_in_p), lambda i: (i, 0)),       # x: batch-tiled, pipelined
            pl.BlockSpec((D_in_p, D_hid_p), lambda i: (0, 0)),  # w_enc: VMEM-resident
            pl.BlockSpec((1, D_hid_p), lambda i: (0, 0)),       # b_enc
            pl.BlockSpec((D_hid_p, D_in_p), lambda i: (0, 0)),  # w_dec: VMEM-resident
            pl.BlockSpec((1, D_in_p), lambda i: (0, 0)),        # b_dec
        ],
        out_specs=pl.BlockSpec((TB, D_in_p), lambda i: (i, 0)),
        compiler_params=pltpu.CompilerParams(
            dimension_semantics=("parallel",),     # shard batch tiles across TCs (v7x)
            vmem_limit_bytes=vmem_limit_bytes,
        ),
        cost_estimate=cost,
    )(xp, we, be, wd, bd)

    # Slice only if the feature dim was actually padded (rows are already exact).
    if D_in_p != D_in:
        out = out[:, :D_in]
    return out


def reference_forward(x, w_enc, b_enc, w_dec, b_dec):
    z = jnp.maximum(x @ w_enc + b_enc, 0.0)
    return jax.nn.sigmoid(z @ w_dec + b_dec)


if __name__ == "__main__":
    key = jax.random.PRNGKey(0)
    B, D_in, D_hid = 8, 256, 64

    k_x, k_we, k_be, k_wd, k_bd = jax.random.split(key, 5)
    x = jax.random.normal(k_x, (B, D_in), dtype=jnp.float32)

    # Deterministic parameter init (uniform, PyTorch-Linear-style scale),
    # weights stored as (in_features, out_features).
    lim_e = 1.0 / (D_in ** 0.5)
    lim_d = 1.0 / (D_hid ** 0.5)
    w_enc = jax.random.uniform(k_we, (D_in, D_hid), jnp.float32, -lim_e, lim_e)
    b_enc = jax.random.uniform(k_be, (D_hid,), jnp.float32, -lim_e, lim_e)
    w_dec = jax.random.uniform(k_wd, (D_hid, D_in), jnp.float32, -lim_d, lim_d)
    b_dec = jax.random.uniform(k_bd, (D_in,), jnp.float32, -lim_d, lim_d)

    # Pad/prepare parameters once (outside the per-call hot path).
    params = prepare_autoencoder_params(w_enc, b_enc, w_dec, b_dec)

    out = autoencoder_forward(x, params)
    jax.block_until_ready(out)

    ref = reference_forward(x, w_enc, b_enc, w_dec, b_dec)
    assert out.shape == (B, D_in)
    assert jnp.allclose(out, ref, atol=1e-5, rtol=1e-5), "mismatch vs reference"

    print("KERNEL_OK")
</pallas_src>

<mosaic_0001>
module attributes {stable_mosaic.version = 11 : i64} {
  func.func @_autoencoder_kernel(%arg0: i32, %arg1: memref<8x256xf32, #tpu.memory_space<vmem>>, %arg2: memref<256x128xf32, #tpu.memory_space<vmem>>, %arg3: memref<1x128xf32, #tpu.memory_space<vmem>>, %arg4: memref<128x256xf32, #tpu.memory_space<vmem>>, %arg5: memref<1x256xf32, #tpu.memory_space<vmem>>, %arg6: memref<8x256xf32, #tpu.memory_space<vmem>>) attributes {dimension_semantics = [#tpu.dimension_semantics<parallel>], iteration_bounds = array<i64: 1>, scalar_prefetch = 0 : i64, scratch_operands = 0 : i64, tpu.core_type = #tpu.core_type<tc>, window_params = [{transform_indices = @transform_0, window_bounds = array<i64: 8, 256>}, {pipeline_mode = #tpu.pipeline_mode<synchronous>, transform_indices = @transform_1, window_bounds = array<i64: 256, 128>}, {pipeline_mode = #tpu.pipeline_mode<synchronous>, transform_indices = @transform_2, window_bounds = array<i64: 1, 128>}, {pipeline_mode = #tpu.pipeline_mode<synchronous>, transform_indices = @transform_3, window_bounds = array<i64: 128, 256>}, {pipeline_mode = #tpu.pipeline_mode<synchronous>, transform_indices = @transform_4, window_bounds = array<i64: 1, 256>}, {transform_indices = @transform_5, window_bounds = array<i64: 8, 256>}]} {
    %c0 = arith.constant 0 : index
    %c0_0 = arith.constant 0 : index
    %0 = vector.load %arg1[%c0, %c0_0] : memref<8x256xf32, #tpu.memory_space<vmem>>, vector<8x256xf32>
    %c0_1 = arith.constant 0 : index
    %c0_2 = arith.constant 0 : index
    %1 = vector.load %arg2[%c0_1, %c0_2] : memref<256x128xf32, #tpu.memory_space<vmem>>, vector<256x128xf32>
    %cst = arith.constant dense<0.000000e+00> : vector<8x128xf32>
    %2 = tpu.matmul %0, %1, %cst {dimension_numbers = #tpu.dot_dimension_numbers<[1], [0], [0], [1], [0, 0, 1, 1], [], []>, precision = #tpu.contract_precision<fp32>} : vector<8x256xf32>, vector<256x128xf32>, vector<8x128xf32> -> vector<8x128xf32>
    %c0_3 = arith.constant 0 : index
    %c0_4 = arith.constant 0 : index
    %3 = vector.load %arg3[%c0_3, %c0_4] : memref<1x128xf32, #tpu.memory_space<vmem>>, vector<1x128xf32>
    %4 = vector.broadcast %3 : vector<1x128xf32> to vector<8x128xf32>
    %5 = arith.addf %2, %4 : vector<8x128xf32>
    %cst_5 = arith.constant 0.000000e+00 : f32
    %6 = vector.broadcast %cst_5 : f32 to vector<8x128xf32>
    %7 = arith.maximumf %5, %6 : vector<8x128xf32>
    %c0_6 = arith.constant 0 : index
    %c0_7 = arith.constant 0 : index
    %8 = vector.load %arg4[%c0_6, %c0_7] : memref<128x256xf32, #tpu.memory_space<vmem>>, vector<128x256xf32>
    %cst_8 = arith.constant dense<0.000000e+00> : vector<8x256xf32>
    %9 = tpu.matmul %7, %8, %cst_8 {dimension_numbers = #tpu.dot_dimension_numbers<[1], [0], [0], [1], [0, 0, 1, 1], [], []>, precision = #tpu.contract_precision<fp32>} : vector<8x128xf32>, vector<128x256xf32>, vector<8x256xf32> -> vector<8x256xf32>
    %c0_9 = arith.constant 0 : index
    %c0_10 = arith.constant 0 : index
    %10 = vector.load %arg5[%c0_9, %c0_10] : memref<1x256xf32, #tpu.memory_space<vmem>>, vector<1x256xf32>
    %11 = vector.broadcast %10 : vector<1x256xf32> to vector<8x256xf32>
    %12 = arith.addf %9, %11 : vector<8x256xf32>
    %cst_11 = arith.constant 5.000000e-01 : f32
    %13 = vector.broadcast %cst_11 : f32 to vector<8x256xf32>
    %14 = arith.mulf %13, %12 : vector<8x256xf32>
    %15 = math.tanh %14 : vector<8x256xf32>
    %cst_12 = arith.constant 5.000000e-01 : f32
    %16 = vector.broadcast %cst_12 : f32 to vector<8x256xf32>
    %17 = arith.mulf %16, %15 : vector<8x256xf32>
    %cst_13 = arith.constant 5.000000e-01 : f32
    %18 = vector.broadcast %cst_13 : f32 to vector<8x256xf32>
    %19 = arith.addf %17, %18 : vector<8x256xf32>
    %c0_14 = arith.constant 0 : index
    %c0_15 = arith.constant 0 : index
    %20 = vector.load %arg6[%c0_14, %c0_15] : memref<8x256xf32, #tpu.memory_space<vmem>>, vector<8x256xf32>
    tpu.vector_store %arg6[%c0_14, %c0_15], %19 {strides = array<i32>} : memref<8x256xf32, #tpu.memory_space<vmem>>, vector<8x256xf32>,
    return
  }
  func.func @transform_0(%arg0: i32) -> (i32, i32) {
    %c0_i32 = arith.constant 0 : i32
    %c0_i32_0 = arith.constant 0 : i32
    return %arg0, %c0_i32 : i32, i32
  }
  func.func @transform_1(%arg0: i32) -> (i32, i32) {
    %c0_i32 = arith.constant 0 : i32
    %c0_i32_0 = arith.constant 0 : i32
    %c0_i32_1 = arith.constant 0 : i32
    return %c0_i32, %c0_i32_0 : i32, i32
  }
  func.func @transform_2(%arg0: i32) -> (i32, i32) {
    %c0_i32 = arith.constant 0 : i32
    %c0_i32_0 = arith.constant 0 : i32
    %c0_i32_1 = arith.constant 0 : i32
    return %c0_i32, %c0_i32_0 : i32, i32
  }
  func.func @transform_3(%arg0: i32) -> (i32, i32) {
    %c0_i32 = arith.constant 0 : i32
    %c0_i32_0 = arith.constant 0 : i32
    %c0_i32_1 = arith.constant 0 : i32
    return %c0_i32, %c0_i32_0 : i32, i32
  }
  func.func @transform_4(%arg0: i32) -> (i32, i32) {
    %c0_i32 = arith.constant 0 : i32
    %c0_i32_0 = arith.constant 0 : i32
    %c0_i32_1 = arith.constant 0 : i32
    return %c0_i32, %c0_i32_0 : i32, i32
  }
  func.func @transform_5(%arg0: i32) -> (i32, i32) {
    %c0_i32 = arith.constant 0 : i32
    %c0_i32_0 = arith.constant 0 : i32
    return %arg0, %c0_i32 : i32, i32
  }
}

</mosaic_0001>

<llo_original>
// kernel: tpu_custom_call.1
$region0: #{tpu_custom_call.1}
  #allocation0 [shape = 'u32[]', space=smem, size = 0x4, offset = 0x4, fixed_abs, tag = 'smem constant byte address 0x4 - core index']
  #allocation1 [shape = 'u32[144,128]{1,0:T(1,128)}', space=vmem, size = 0x12000, scoped, tag = 'internal scratch']
  %s0 = inlined_call_operand.hbm [shape: f32[8,256], index: 0, kind: input, shape index: {}]
  %s1 = inlined_call_operand.hbm [shape: f32[256,128], index: 1, kind: input, shape index: {}]
  %s2 = inlined_call_operand.vmem [shape: f32[1,128], index: 2, kind: input, shape index: {}]
  %s3 = inlined_call_operand.hbm [shape: f32[128,256], index: 3, kind: input, shape index: {}]
  %s4 = inlined_call_operand.vmem [shape: f32[1,256], index: 4, kind: input, shape index: {}]
  %s5 = inlined_call_operand.hbm [shape: f32[8,256], index: 5, kind: output, shape index: {}]
  %s6 = sld [smem:[#allocation0]]
  $region42: #{tpu_custom_call.1} parent=0
    _
  %s8 = ssub.s32 1, %s6
  %s9 = scalar_select 0, %s8, %s6
  $region1: #{tpu_custom_call.1} parent=0
    #allocation2 [shape = 'u8[8192]{0}', space=vmem, size = 0x2000, scoped, tag = 'input window, operand 0, single buffered']
    #allocation3 [shape = 's32[1]{0}', space=sflag, size = 0x4, scoped, tag = 'scoped memory for tpu_custom_call.1']
    #allocation4 [shape = 's32[1]{0}', space=sflag, size = 0x4, scoped, tag = 'scoped memory for tpu_custom_call.1']
    #allocation5 [shape = 'u8[131072]{0}', space=vmem, size = 0x20000, scoped, tag = 'input window, operand 1, single buffered']
    #allocation6 [shape = 's32[1]{0}', space=sflag, size = 0x4, scoped, tag = 'scoped memory for tpu_custom_call.1']
    #allocation7 [shape = 'u8[131072]{0}', space=vmem, size = 0x20000, scoped, tag = 'input window, operand 3, single buffered']
    #allocation8 [shape = 'u8[8192]{0}', space=vmem, size = 0x2000, scoped, tag = 'output window, operand 0, single buffered']
    %10 = vsyncpa [#allocation3], 0
    %11 = vsyncpa [#allocation6], 0
    %12 = vsyncpa [#allocation4], 0
    // Predicated region
    $region2: #{tpu_custom_call.1} parent=1 // pred_check
      _
    $region3: #{tpu_custom_call.1} parent=1 // pred_check_branch
      %14 = sbr.rel (0) target = $region5
    $region4: #{tpu_custom_call.1} parent=1 // pred_region
      %s16 = ssub.s32 256, 256
      %17 = vsyncadd [#allocation3], %s16
      %s19 = sshll.u32 [#allocation2], 4
      %s20 = int_to_ptr.vmem [resolvable:$true] %s19
      %22 = dma.hbm_to_vmem [thread:$0]  %s0, 256, %s20, [#allocation3]
    $region5: #{tpu_custom_call.1} parent=1 // pred_fallthru
      _
    // Predicated region
    $region6: #{tpu_custom_call.1} parent=1 // pred_check
      _
    $region7: #{tpu_custom_call.1} parent=1 // pred_check_branch
      %24 = sbr.rel (0) target = $region9
    $region8: #{tpu_custom_call.1} parent=1 // pred_region
      %s26 = ssub.s32 4096, 4096
      %27 = vsyncadd [#allocation6], %s26
      %s28 = sshll.u32 [#allocation5], 4
      %s29 = int_to_ptr.vmem [resolvable:$true] %s28
      %34 = dma.hbm_to_vmem [thread:$0]  %s1, 4096, %s29, [#allocation6], 128, 128, 8
    $region9: #{tpu_custom_call.1} parent=1 // pred_fallthru
      _
    // Predicated region
    $region10: #{tpu_custom_call.1} parent=1 // pred_check
      _
    $region11: #{tpu_custom_call.1} parent=1 // pred_check_branch
      %36 = sbr.rel (0) target = $region13
    $region12: #{tpu_custom_call.1} parent=1 // pred_region
      _
    $region13: #{tpu_custom_call.1} parent=1 // pred_fallthru
      _
    // Predicated region
    $region14: #{tpu_custom_call.1} parent=1 // pred_check
      _
    $region15: #{tpu_custom_call.1} parent=1 // pred_check_branch
      %38 = sbr.rel (0) target = $region17
    $region16: #{tpu_custom_call.1} parent=1 // pred_region
      %s40 = ssub.s32 4096, 4096
      %41 = vsyncadd [#allocation6], %s40
      %s42 = sshll.u32 [#allocation7], 4
      %s43 = int_to_ptr.vmem [resolvable:$true] %s42
      %48 = dma.hbm_to_vmem [thread:$0]  %s3, 4096, %s43, [#allocation6], 256, 256, 16
    $region17: #{tpu_custom_call.1} parent=1 // pred_fallthru
      _
    // Predicated region
    $region18: #{tpu_custom_call.1} parent=1 // pred_check
      _
    $region19: #{tpu_custom_call.1} parent=1 // pred_check_branch
      %50 = sbr.rel (0) target = $region21
    $region20: #{tpu_custom_call.1} parent=1 // pred_region
      _
    $region21: #{tpu_custom_call.1} parent=1 // pred_fallthru
      _
    // Predicated region
    $region22: #{tpu_custom_call.1} parent=1 // pred_check
      _
    $region23: #{tpu_custom_call.1} parent=1 // pred_check_branch
      %52 = sbr.rel (0) target = $region25
    $region24: #{tpu_custom_call.1} parent=1 // pred_region
      %53 = dma.done [#allocation3], 256
    $region25: #{tpu_custom_call.1} parent=1 // pred_fallthru
      _
    // Predicated region
    $region26: #{tpu_custom_call.1} parent=1 // pred_check
      _
    $region27: #{tpu_custom_call.1} parent=1 // pred_check_branch
      %55 = sbr.rel (0) target = $region29
    $region28: #{tpu_custom_call.1} parent=1 // pred_region
      %56 = dma.done [#allocation6], 4096
    $region29: #{tpu_custom_call.1} parent=1 // pred_fallthru
      _
    // Predicated region
    $region30: #{tpu_custom_call.1} parent=1 // pred_check
      _
    $region31: #{tpu_custom_call.1} parent=1 // pred_check_branch
      %58 = sbr.rel (0) target = $region33
    $region32: #{tpu_custom_call.1} parent=1 // pred_region
      %59 = dma.done [#allocation6], 4096
    $region33: #{tpu_custom_call.1} parent=1 // pred_fallthru
      _
    %v60 = vld [vmem:[#allocation2] sm:$0xff]
    %v61 = vld [vmem:[#allocation2 + $0x8] sm:$0xff]
    %v62 = vld [vmem:[#allocation5] sm:$0xff]
    %v63 = vld [vmem:[#allocation5 + $0x8] sm:$0xff]
    %v64 = vld [vmem:[#allocation5 + $0x10] sm:$0xff]
    %v65 = vld [vmem:[#allocation5 + $0x18] sm:$0xff]
    %v66 = vld [vmem:[#allocation5 + $0x20] sm:$0xff]
    %v67 = vld [vmem:[#allocation5 + $0x28] sm:$0xff]
    %v68 = vld [vmem:[#allocation5 + $0x30] sm:$0xff]
    %v69 = vld [vmem:[#allocation5 + $0x38] sm:$0xff]
    %v70 = vld [vmem:[#allocation5 + $0x40] sm:$0xff]
    %v71 = vld [vmem:[#allocation5 + $0x48] sm:$0xff]
    %v72 = vld [vmem:[#allocation5 + $0x50] sm:$0xff]
    %v73 = vld [vmem:[#allocation5 + $0x58] sm:$0xff]
    %v74 = vld [vmem:[#allocation5 + $0x60] sm:$0xff]
    %v75 = vld [vmem:[#allocation5 + $0x68] sm:$0xff]
    %v76 = vld [vmem:[#allocation5 + $0x70] sm:$0xff]
    %v77 = vld [vmem:[#allocation5 + $0x78] sm:$0xff]
    %v78 = vld [vmem:[#allocation5 + $0x80] sm:$0xff]
    %v79 = vld [vmem:[#allocation5 + $0x88] sm:$0xff]
    %v80 = vld [vmem:[#allocation5 + $0x90] sm:$0xff]
    %v81 = vld [vmem:[#allocation5 + $0x98] sm:$0xff]
    %v82 = vld [vmem:[#allocation5 + $0xa0] sm:$0xff]
    %v83 = vld [vmem:[#allocation5 + $0xa8] sm:$0xff]
    %v84 = vld [vmem:[#allocation5 + $0xb0] sm:$0xff]
    %v85 = vld [vmem:[#allocation5 + $0xb8] sm:$0xff]
    %v86 = vld [vmem:[#allocation5 + $0xc0] sm:$0xff]
    %v87 = vld [vmem:[#allocation5 + $0xc8] sm:$0xff]
    %v88 = vld [vmem:[#allocation5 + $0xd0] sm:$0xff]
    %v89 = vld [vmem:[#allocation5 + $0xd8] sm:$0xff]
    %v90 = vld [vmem:[#allocation5 + $0xe0] sm:$0xff]
    %v91 = vld [vmem:[#allocation5 + $0xe8] sm:$0xff]
    %v92 = vld [vmem:[#allocation5 + $0xf0] sm:$0xff]
    %v93 = vld [vmem:[#allocation5 + $0xf8] sm:$0xff]
    %v94 = vld [vmem:[%s2] sm:$0x1]
    %v96 = vlaneseq
    %v97 = vshrl.u32 %v96, 7
    %v98 = vsub.s32 0, %v97
    %v99 = vrot.slane %v94, %v98
    %101 = vmatprep.subr.mxu0 0.0
    %v102 = vand.u32 %v62, 4294901760
    %103 = vmatpush1.msra.mxu0 %v102
    %104 = vmatprep.subr.mxu0 0.0
    %v105 = vand.u32 %v63, 4294901760
    %106 = vmatpush1.msra.mxu0 %v105
    %107 = vmatprep.subr.mxu0 0.0
    %v108 = vand.u32 %v64, 4294901760
    %109 = vmatpush1.msra.mxu0 %v108
    %110 = vmatprep.subr.mxu0 0.0
    %v111 = vand.u32 %v65, 4294901760
    %112 = vmatpush1.msra.mxu0 %v111
    %113 = vmatprep.subr.mxu0 0.0
    %v114 = vand.u32 %v66, 4294901760
    %115 = vmatpush1.msra.mxu0 %v114
    %116 = vmatprep.subr.mxu0 0.0
    %v117 = vand.u32 %v67, 4294901760
    %118 = vmatpush1.msra.mxu0 %v117
    %119 = vmatprep.subr.mxu0 0.0
    %v120 = vand.u32 %v68, 4294901760
    %121 = vmatpush1.msra.mxu0 %v120
    %122 = vmatprep.subr.mxu0 0.0
    %v123 = vand.u32 %v69, 4294901760
    %124 = vmatpush1.msra.mxu0 %v123
    %125 = vmatprep.subr.mxu0 0.0
    %v126 = vand.u32 %v70, 4294901760
    %127 = vmatpush1.msra.mxu0 %v126
    %128 = vmatprep.subr.mxu0 0.0
    %v129 = vand.u32 %v71, 4294901760
    %130 = vmatpush1.msra.mxu0 %v129
    %131 = vmatprep.subr.mxu0 0.0
    %v132 = vand.u32 %v72, 4294901760
    %133 = vmatpush1.msra.mxu0 %v132
    %134 = vmatprep.subr.mxu0 0.0
    %v135 = vand.u32 %v73, 4294901760
    %136 = vmatpush1.msra.mxu0 %v135
    %137 = vmatprep.subr.mxu0 0.0
    %v138 = vand.u32 %v74, 4294901760
    %139 = vmatpush1.msra.mxu0 %v138
    %140 = vmatprep.subr.mxu0 0.0
    %v141 = vand.u32 %v75, 4294901760
    %142 = vmatpush1.msra.mxu0 %v141
    %143 = vmatprep.subr.mxu0 0.0
    %v144 = vand.u32 %v76, 4294901760
    %145 = vmatpush1.msra.mxu0 %v144
    %146 = vmatprep.subr.mxu0 0.0
    %v147 = vand.u32 %v77, 4294901760
    %148 = vmatpush1.msra.mxu0 %v147
    %149 = vmatprep.subr.mxu0 0.0
    %v150 = vand.u32 %v78, 4294901760
    %151 = vmatpush1.msra.mxu0 %v150
    %152 = vmatprep.subr.mxu0 0.0
    %v153 = vand.u32 %v79, 4294901760
    %154 = vmatpush1.msra.mxu0 %v153
    %155 = vmatprep.subr.mxu0 0.0
    %v156 = vand.u32 %v80, 4294901760
    %157 = vmatpush1.msra.mxu0 %v156
    %158 = vmatprep.subr.mxu0 0.0
    %v159 = vand.u32 %v81, 4294901760
    %160 = vmatpush1.msra.mxu0 %v159
    %161 = vmatprep.subr.mxu0 0.0
    %v162 = vand.u32 %v82, 4294901760
    %163 = vmatpush1.msra.mxu0 %v162
    %164 = vmatprep.subr.mxu0 0.0
    %v165 = vand.u32 %v83, 4294901760
    %166 = vmatpush1.msra.mxu0 %v165
    %167 = vmatprep.subr.mxu0 0.0
    %v168 = vand.u32 %v84, 4294901760
    %169 = vmatpush1.msra.mxu0 %v168
    %170 = vmatprep.subr.mxu0 0.0
    %v171 = vand.u32 %v85, 4294901760
    %172 = vmatpush1.msra.mxu0 %v171
    %173 = vmatprep.subr.mxu0 0.0
    %v174 = vand.u32 %v86, 4294901760
    %175 = vmatpush1.msra.mxu0 %v174
    %176 = vmatprep.subr.mxu0 0.0
    %v177 = vand.u32 %v87, 4294901760
    %178 = vmatpush1.msra.mxu0 %v177
    %179 = vmatprep.subr.mxu0 0.0
    %v180 = vand.u32 %v88, 4294901760
    %181 = vmatpush1.msra.mxu0 %v180
    %182 = vmatprep.subr.mxu0 0.0
    %v183 = vand.u32 %v89, 4294901760
    %184 = vmatpush1.msra.mxu0 %v183
    %185 = vmatprep.subr.mxu0 0.0
    %v186 = vand.u32 %v90, 4294901760
    %187 = vmatpush1.msra.mxu0 %v186
    %188 = vmatprep.subr.mxu0 0.0
    %v189 = vand.u32 %v91, 4294901760
    %190 = vmatpush1.msra.mxu0 %v189
    %191 = vmatprep.subr.mxu0 0.0
    %v192 = vand.u32 %v92, 4294901760
    %193 = vmatpush1.msra.mxu0 %v192
    %194 = vmatprep.subr.mxu0 0.0
    %v195 = vand.u32 %v93, 4294901760
    %196 = vmatpush1.msra.mxu0 %v195
    %v197 = vand.u32 %v61, 4294901760
    %v198 = vsub.f32 %v61, %v197
    %v199 = vand.u32 %v198, 4294901760
    %v200 = vsub.f32 %v198, %v199
    %v201 = vand.u32 %v200, 4294901760
    %202 = vmatprep.mubr.f32.mxu0 %v201
    %v203 = vand.u32 %v60, 4294901760
    %v204 = vsub.f32 %v60, %v203
    %v205 = vand.u32 %v204, 4294901760
    %v206 = vsub.f32 %v204, %v205
    %v207 = vand.u32 %v206, 4294901760
    %208 = vmatmul.mubr.f32.gmra.mrb[0].mxu0 %v207
    %v209 = vpop.f32.mrb[0].mxu0
    %v210 = vadd.f32 %v99, %v209
    %v211 = vpop.f32.mrb[0].mxu0
    %212 = vdwg.mxu0
    %213 = vmatprep.subr.mxu0 0.0
    %v214 = vand.u32 %v62, 4294901760
    %v215 = vsub.f32 %v62, %v214
    %v216 = vand.u32 %v215, 4294901760
    %v217 = vsub.f32 %v215, %v216
    %v218 = vand.u32 %v217, 4294901760
    %219 = vmatpush1.msra.mxu0 %v218
    %220 = vmatprep.subr.mxu0 0.0
    %v221 = vand.u32 %v63, 4294901760
    %v222 = vsub.f32 %v63, %v221
    %v223 = vand.u32 %v222, 4294901760
    %v224 = vsub.f32 %v222, %v223
    %v225 = vand.u32 %v224, 4294901760
    %226 = vmatpush1.msra.mxu0 %v225
    %227 = vmatprep.subr.mxu0 0.0
    %v228 = vand.u32 %v64, 4294901760
    %v229 = vsub.f32 %v64, %v228
    %v230 = vand.u32 %v229, 4294901760
    %v231 = vsub.f32 %v229, %v230
    %v232 = vand.u32 %v231, 4294901760
    %233 = vmatpush1.msra.mxu0 %v232
    %234 = vmatprep.subr.mxu0 0.0
    %v235 = vand.u32 %v65, 4294901760
    %v236 = vsub.f32 %v65, %v235
    %v237 = vand.u32 %v236, 4294901760
    %v238 = vsub.f32 %v236, %v237
    %v239 = vand.u32 %v238, 4294901760
    %240 = vmatpush1.msra.mxu0 %v239
    %241 = vmatprep.subr.mxu0 0.0
    %v242 = vand.u32 %v66, 4294901760
    %v243 = vsub.f32 %v66, %v242
    %v244 = vand.u32 %v243, 4294901760
    %v245 = vsub.f32 %v243, %v244
    %v246 = vand.u32 %v245, 4294901760
    %247 = vmatpush1.msra.mxu0 %v246
    %248 = vmatprep.subr.mxu0 0.0
    %v249 = vand.u32 %v67, 4294901760
    %v250 = vsub.f32 %v67, %v249
    %v251 = vand.u32 %v250, 4294901760
    %v252 = vsub.f32 %v250, %v251
    %v253 = vand.u32 %v252, 4294901760
    %254 = vmatpush1.msra.mxu0 %v253
    %255 = vmatprep.subr.mxu0 0.0
    %v256 = vand.u32 %v68, 4294901760
    %v257 = vsub.f32 %v68, %v256
    %v258 = vand.u32 %v257, 4294901760
    %v259 = vsub.f32 %v257, %v258
    %v260 = vand.u32 %v259, 4294901760
    %261 = vmatpush1.msra.mxu0 %v260
    %262 = vmatprep.subr.mxu0 0.0
    %v263 = vand.u32 %v69, 4294901760
    %v264 = vsub.f32 %v69, %v263
    %v265 = vand.u32 %v264, 4294901760
    %v266 = vsub.f32 %v264, %v265
    %v267 = vand.u32 %v266, 4294901760
    %268 = vmatpush1.msra.mxu0 %v267
    %269 = vmatprep.subr.mxu0 0.0
    %v270 = vand.u32 %v70, 4294901760
    %v271 = vsub.f32 %v70, %v270
    %v272 = vand.u32 %v271, 4294901760
    %v273 = vsub.f32 %v271, %v272
    %v274 = vand.u32 %v273, 4294901760
    %275 = vmatpush1.msra.mxu0 %v274
    %276 = vmatprep.subr.mxu0 0.0
    %v277 = vand.u32 %v71, 4294901760
    %v278 = vsub.f32 %v71, %v277
    %v279 = vand.u32 %v278, 4294901760
    %v280 = vsub.f32 %v278, %v279
    %v281 = vand.u32 %v280, 4294901760
    %282 = vmatpush1.msra.mxu0 %v281
    %283 = vmatprep.subr.mxu0 0.0
    %v284 = vand.u32 %v72, 4294901760
    %v285 = vsub.f32 %v72, %v284
    %v286 = vand.u32 %v285, 4294901760
    %v287 = vsub.f32 %v285, %v286
    %v288 = vand.u32 %v287, 4294901760
    %289 = vmatpush1.msra.mxu0 %v288
    %290 = vmatprep.subr.mxu0 0.0
    %v291 = vand.u32 %v73, 4294901760
    %v292 = vsub.f32 %v73, %v291
    %v293 = vand.u32 %v292, 4294901760
    %v294 = vsub.f32 %v292, %v293
    %v295 = vand.u32 %v294, 4294901760
    %296 = vmatpush1.msra.mxu0 %v295
    %297 = vmatprep.subr.mxu0 0.0
    %v298 = vand.u32 %v74, 4294901760
    %v299 = vsub.f32 %v74, %v298
    %v300 = vand.u32 %v299, 4294901760
    %v301 = vsub.f32 %v299, %v300
    %v302 = vand.u32 %v301, 4294901760
    %303 = vmatpush1.msra.mxu0 %v302
    %304 = vmatprep.subr.mxu0 0.0
    %v305 = vand.u32 %v75, 4294901760
    %v306 = vsub.f32 %v75, %v305
    %v307 = vand.u32 %v306, 4294901760
    %v308 = vsub.f32 %v306, %v307
    %v309 = vand.u32 %v308, 4294901760
    %310 = vmatpush1.msra.mxu0 %v309
    %311 = vmatprep.subr.mxu0 0.0
    %v312 = vand.u32 %v76, 4294901760
    %v313 = vsub.f32 %v76, %v312
    %v314 = vand.u32 %v313, 4294901760
    %v315 = vsub.f32 %v313, %v314
    %v316 = vand.u32 %v315, 4294901760
    %317 = vmatpush1.msra.mxu0 %v316
    %318 = vmatprep.subr.mxu0 0.0
    %v319 = vand.u32 %v77, 4294901760
    %v320 = vsub.f32 %v77, %v319
    %v321 = vand.u32 %v320, 4294901760
    %v322 = vsub.f32 %v320, %v321
    %v323 = vand.u32 %v322, 4294901760
    %324 = vmatpush1.msra.mxu0 %v323
    %325 = vmatprep.subr.mxu0 0.0
    %v326 = vand.u32 %v78, 4294901760
    %v327 = vsub.f32 %v78, %v326
    %v328 = vand.u32 %v327, 4294901760
    %v329 = vsub.f32 %v327, %v328
    %v330 = vand.u32 %v329, 4294901760
    %331 = vmatpush1.msra.mxu0 %v330
    %332 = vmatprep.subr.mxu0 0.0
    %v333 = vand.u32 %v79, 4294901760
    %v334 = vsub.f32 %v79, %v333
    %v335 = vand.u32 %v334, 4294901760
    %v336 = vsub.f32 %v334, %v335
    %v337 = vand.u32 %v336, 4294901760
    %338 = vmatpush1.msra.mxu0 %v337
    %339 = vmatprep.subr.mxu0 0.0
    %v340 = vand.u32 %v80, 4294901760
    %v341 = vsub.f32 %v80, %v340
    %v342 = vand.u32 %v341, 4294901760
    %v343 = vsub.f32 %v341, %v342
    %v344 = vand.u32 %v343, 4294901760
    %345 = vmatpush1.msra.mxu0 %v344
    %346 = vmatprep.subr.mxu0 0.0
    %v347 = vand.u32 %v81, 4294901760
    %v348 = vsub.f32 %v81, %v347
    %v349 = vand.u32 %v348, 4294901760
    %v350 = vsub.f32 %v348, %v349
    %v351 = vand.u32 %v350, 4294901760
    %352 = vmatpush1.msra.mxu0 %v351
    %353 = vmatprep.subr.mxu0 0.0
    %v354 = vand.u32 %v82, 4294901760
    %v355 = vsub.f32 %v82, %v354
    %v356 = vand.u32 %v355, 4294901760
    %v357 = vsub.f32 %v355, %v356
    %v358 = vand.u32 %v357, 4294901760
    %359 = vmatpush1.msra.mxu0 %v358
    %360 = vmatprep.subr.mxu0 0.0
    %v361 = vand.u32 %v83, 4294901760
    %v362 = vsub.f32 %v83, %v361
    %v363 = vand.u32 %v362, 4294901760
    %v364 = vsub.f32 %v362, %v363
    %v365 = vand.u32 %v364, 4294901760
    %366 = vmatpush1.msra.mxu0 %v365
    %367 = vmatprep.subr.mxu0 0.0
    %v368 = vand.u32 %v84, 4294901760
    %v369 = vsub.f32 %v84, %v368
    %v370 = vand.u32 %v369, 4294901760
    %v371 = vsub.f32 %v369, %v370
    %v372 = vand.u32 %v371, 4294901760
    %373 = vmatpush1.msra.mxu0 %v372
    %374 = vmatprep.subr.mxu0 0.0
    %v375 = vand.u32 %v85, 4294901760
    %v376 = vsub.f32 %v85, %v375
    %v377 = vand.u32 %v376, 4294901760
    %v378 = vsub.f32 %v376, %v377
    %v379 = vand.u32 %v378, 4294901760
    %380 = vmatpush1.msra.mxu0 %v379
    %381 = vmatprep.subr.mxu0 0.0
    %v382 = vand.u32 %v86, 4294901760
    %v383 = vsub.f32 %v86, %v382
    %v384 = vand.u32 %v383, 4294901760
    %v385 = vsub.f32 %v383, %v384
    %v386 = vand.u32 %v385, 4294901760
    %387 = vmatpush1.msra.mxu0 %v386
    %388 = vmatprep.subr.mxu0 0.0
    %v389 = vand.u32 %v87, 4294901760
    %v390 = vsub.f32 %v87, %v389
    %v391 = vand.u32 %v390, 4294901760
    %v392 = vsub.f32 %v390, %v391
    %v393 = vand.u32 %v392, 4294901760
    %394 = vmatpush1.msra.mxu0 %v393
    %395 = vmatprep.subr.mxu0 0.0
    %v396 = vand.u32 %v88, 4294901760
    %v397 = vsub.f32 %v88, %v396
    %v398 = vand.u32 %v397, 4294901760
    %v399 = vsub.f32 %v397, %v398
    %v400 = vand.u32 %v399, 4294901760
    %401 = vmatpush1.msra.mxu0 %v400
    %402 = vmatprep.subr.mxu0 0.0
    %v403 = vand.u32 %v89, 4294901760
    %v404 = vsub.f32 %v89, %v403
    %v405 = vand.u32 %v404, 4294901760
    %v406 = vsub.f32 %v404, %v405
    %v407 = vand.u32 %v406, 4294901760
    %408 = vmatpush1.msra.mxu0 %v407
    %409 = vmatprep.subr.mxu0 0.0
    %v410 = vand.u32 %v90, 4294901760
    %v411 = vsub.f32 %v90, %v410
    %v412 = vand.u32 %v411, 4294901760
    %v413 = vsub.f32 %v411, %v412
    %v414 = vand.u32 %v413, 4294901760
    %415 = vmatpush1.msra.mxu0 %v414
    %416 = vmatprep.subr.mxu0 0.0
    %v417 = vand.u32 %v91, 4294901760
    %v418 = vsub.f32 %v91, %v417
    %v419 = vand.u32 %v418, 4294901760
    %v420 = vsub.f32 %v418, %v419
    %v421 = vand.u32 %v420, 4294901760
    %422 = vmatpush1.msra.mxu0 %v421
    %423 = vmatprep.subr.mxu0 0.0
    %v424 = vand.u32 %v92, 4294901760
    %v425 = vsub.f32 %v92, %v424
    %v426 = vand.u32 %v425, 4294901760
    %v427 = vsub.f32 %v425, %v426
    %v428 = vand.u32 %v427, 4294901760
    %429 = vmatpush1.msra.mxu0 %v428
    %430 = vmatprep.subr.mxu0 0.0
    %v431 = vand.u32 %v93, 4294901760
    %v432 = vsub.f32 %v93, %v431
    %v433 = vand.u32 %v432, 4294901760
    %v434 = vsub.f32 %v432, %v433
    %v435 = vand.u32 %v434, 4294901760
    %436 = vmatpush1.msra.mxu0 %v435
    %v437 = vand.u32 %v61, 4294901760
    %438 = vmatprep.mubr.f32.mxu0 %v437
    %v439 = vand.u32 %v60, 4294901760
    %440 = vmatmul.mubr.f32.gmra.mrb[0].mxu0 %v439
    %v441 = vpop.f32.mrb[0].mxu0
    %v442 = vadd.f32 %v210, %v441
    %v443 = vpop.f32.mrb[0].mxu0
    %444 = vdwg.mxu0
    %445 = vmatprep.subr.mxu0 0.0
    %v446 = vand.u32 %v62, 4294901760
    %v447 = vsub.f32 %v62, %v446
    %448 = vmatpush1.msra.mxu0 %v447
    %449 = vmatprep.subr.mxu0 0.0
    %v450 = vand.u32 %v63, 4294901760
    %v451 = vsub.f32 %v63, %v450
    %452 = vmatpush1.msra.mxu0 %v451
    %453 = vmatprep.subr.mxu0 0.0
    %v454 = vand.u32 %v64, 4294901760
    %v455 = vsub.f32 %v64, %v454
    %456 = vmatpush1.msra.mxu0 %v455
    %457 = vmatprep.subr.mxu0 0.0
    %v458 = vand.u32 %v65, 4294901760
    %v459 = vsub.f32 %v65, %v458
    %460 = vmatpush1.msra.mxu0 %v459
    %461 = vmatprep.subr.mxu0 0.0
    %v462 = vand.u32 %v66, 4294901760
    %v463 = vsub.f32 %v66, %v462
    %464 = vmatpush1.msra.mxu0 %v463
    %465 = vmatprep.subr.mxu0 0.0
    %v466 = vand.u32 %v67, 4294901760
    %v467 = vsub.f32 %v67, %v466
    %468 = vmatpush1.msra.mxu0 %v467
    %469 = vmatprep.subr.mxu0 0.0
    %v470 = vand.u32 %v68, 4294901760
    %v471 = vsub.f32 %v68, %v470
    %472 = vmatpush1.msra.mxu0 %v471
    %473 = vmatprep.subr.mxu0 0.0
    %v474 = vand.u32 %v69, 4294901760
    %v475 = vsub.f32 %v69, %v474
    %476 = vmatpush1.msra.mxu0 %v475
    %477 = vmatprep.subr.mxu0 0.0
    %v478 = vand.u32 %v70, 4294901760
    %v479 = vsub.f32 %v70, %v478
    %480 = vmatpush1.msra.mxu0 %v479
    %481 = vmatprep.subr.mxu0 0.0
    %v482 = vand.u32 %v71, 4294901760
    %v483 = vsub.f32 %v71, %v482
    %484 = vmatpush1.msra.mxu0 %v483
    %485 = vmatprep.subr.mxu0 0.0
    %v486 = vand.u32 %v72, 4294901760
    %v487 = vsub.f32 %v72, %v486
    %488 = vmatpush1.msra.mxu0 %v487
    %489 = vmatprep.subr.mxu0 0.0
    %v490 = vand.u32 %v73, 4294901760
    %v491 = vsub.f32 %v73, %v490
    %492 = vmatpush1.msra.mxu0 %v491
    %493 = vmatprep.subr.mxu0 0.0
    %v494 = vand.u32 %v74, 4294901760
    %v495 = vsub.f32 %v74, %v494
    %496 = vmatpush1.msra.mxu0 %v495
    %497 = vmatprep.subr.mxu0 0.0
    %v498 = vand.u32 %v75, 4294901760
    %v499 = vsub.f32 %v75, %v498
    %500 = vmatpush1.msra.mxu0 %v499
    %501 = vmatprep.subr.mxu0 0.0
    %v502 = vand.u32 %v76, 4294901760
    %v503 = vsub.f32 %v76, %v502
    %504 = vmatpush1.msra.mxu0 %v503
    %505 = vmatprep.subr.mxu0 0.0
    %v506 = vand.u32 %v77, 4294901760
    %v507 = vsub.f32 %v77, %v506
    %508 = vmatpush1.msra.mxu0 %v507
    %509 = vmatprep.subr.mxu0 0.0
    %v510 = vand.u32 %v78, 4294901760
    %v511 = vsub.f32 %v78, %v510
    %512 = vmatpush1.msra.mxu0 %v511
    %513 = vmatprep.subr.mxu0 0.0
    %v514 = vand.u32 %v79, 4294901760
    %v515 = vsub.f32 %v79, %v514
    %516 = vmatpush1.msra.mxu0 %v515
    %517 = vmatprep.subr.mxu0 0.0
    %v518 = vand.u32 %v80, 4294901760
    %v519 = vsub.f32 %v80, %v518
    %520 = vmatpush1.msra.mxu0 %v519
    %521 = vmatprep.subr.mxu0 0.0
    %v522 = vand.u32 %v81, 4294901760
    %v523 = vsub.f32 %v81, %v522
    %524 = vmatpush1.msra.mxu0 %v523
    %525 = vmatprep.subr.mxu0 0.0
    %v526 = vand.u32 %v82, 4294901760
    %v527 = vsub.f32 %v82, %v526
    %528 = vmatpush1.msra.mxu0 %v527
    %529 = vmatprep.subr.mxu0 0.0
    %v530 = vand.u32 %v83, 4294901760
    %v531 = vsub.f32 %v83, %v530
    %532 = vmatpush1.msra.mxu0 %v531
    %533 = vmatprep.subr.mxu0 0.0
    %v534 = vand.u32 %v84, 4294901760
    %v535 = vsub.f32 %v84, %v534
    %536 = vmatpush1.msra.mxu0 %v535
    %537 = vmatprep.subr.mxu0 0.0
    %v538 = vand.u32 %v85, 4294901760
    %v539 = vsub.f32 %v85, %v538
    %540 = vmatpush1.msra.mxu0 %v539
    %541 = vmatprep.subr.mxu0 0.0
    %v542 = vand.u32 %v86, 4294901760
    %v543 = vsub.f32 %v86, %v542
    %544 = vmatpush1.msra.mxu0 %v543
    %545 = vmatprep.subr.mxu0 0.0
    %v546 = vand.u32 %v87, 4294901760
    %v547 = vsub.f32 %v87, %v546
    %548 = vmatpush1.msra.mxu0 %v547
    %549 = vmatprep.subr.mxu0 0.0
    %v550 = vand.u32 %v88, 4294901760
    %v551 = vsub.f32 %v88, %v550
    %552 = vmatpush1.msra.mxu0 %v551
    %553 = vmatprep.subr.mxu0 0.0
    %v554 = vand.u32 %v89, 4294901760
    %v555 = vsub.f32 %v89, %v554
    %556 = vmatpush1.msra.mxu0 %v555
    %557 = vmatprep.subr.mxu0 0.0
    %v558 = vand.u32 %v90, 4294901760
    %v559 = vsub.f32 %v90, %v558
    %560 = vmatpush1.msra.mxu0 %v559
    %561 = vmatprep.subr.mxu0 0.0
    %v562 = vand.u32 %v91, 4294901760
    %v563 = vsub.f32 %v91, %v562
    %564 = vmatpush1.msra.mxu0 %v563
    %565 = vmatprep.subr.mxu0 0.0
    %v566 = vand.u32 %v92, 4294901760
    %v567 = vsub.f32 %v92, %v566
    %568 = vmatpush1.msra.mxu0 %v567
    %569 = vmatprep.subr.mxu0 0.0
    %v570 = vand.u32 %v93, 4294901760
    %v571 = vsub.f32 %v93, %v570
    %572 = vmatpush1.msra.mxu0 %v571
    %v573 = vand.u32 %v61, 4294901760
    %v574 = vsub.f32 %v61, %v573
    %575 = vmatprep.mubr.f32.mxu0 %v574
    %v576 = vand.u32 %v60, 4294901760
    %v577 = vsub.f32 %v60, %v576
    %578 = vmatmul.mubr.f32.gmra.mrb[0].mxu0 %v577
    %v579 = vpop.f32.mrb[0].mxu0
    %v580 = vadd.f32 %v442, %v579
    %v581 = vpop.f32.mrb[0].mxu0
    %582 = vdwg.mxu0
    %583 = vmatprep.subr.mxu0 0.0
    %v584 = vand.u32 %v62, 4294901760
    %585 = vmatpush1.msra.mxu0 %v584
    %586 = vmatprep.subr.mxu0 0.0
    %v587 = vand.u32 %v63, 4294901760
    %588 = vmatpush1.msra.mxu0 %v587
    %589 = vmatprep.subr.mxu0 0.0
    %v590 = vand.u32 %v64, 4294901760
    %591 = vmatpush1.msra.mxu0 %v590
    %592 = vmatprep.subr.mxu0 0.0
    %v593 = vand.u32 %v65, 4294901760
    %594 = vmatpush1.msra.mxu0 %v593
    %595 = vmatprep.subr.mxu0 0.0
    %v596 = vand.u32 %v66, 4294901760
    %597 = vmatpush1.msra.mxu0 %v596
    %598 = vmatprep.subr.mxu0 0.0
    %v599 = vand.u32 %v67, 4294901760
    %600 = vmatpush1.msra.mxu0 %v599
    %601 = vmatprep.subr.mxu0 0.0
    %v602 = vand.u32 %v68, 4294901760
    %603 = vmatpush1.msra.mxu0 %v602
    %604 = vmatprep.subr.mxu0 0.0
    %v605 = vand.u32 %v69, 4294901760
    %606 = vmatpush1.msra.mxu0 %v605
    %607 = vmatprep.subr.mxu0 0.0
    %v608 = vand.u32 %v70, 4294901760
    %609 = vmatpush1.msra.mxu0 %v608
    %610 = vmatprep.subr.mxu0 0.0
    %v611 = vand.u32 %v71, 4294901760
    %612 = vmatpush1.msra.mxu0 %v611
    %613 = vmatprep.subr.mxu0 0.0
    %v614 = vand.u32 %v72, 4294901760
    %615 = vmatpush1.msra.mxu0 %v614
    %616 = vmatprep.subr.mxu0 0.0
    %v617 = vand.u32 %v73, 4294901760
    %618 = vmatpush1.msra.mxu0 %v617
    %619 = vmatprep.subr.mxu0 0.0
    %v620 = vand.u32 %v74, 4294901760
    %621 = vmatpush1.msra.mxu0 %v620
    %622 = vmatprep.subr.mxu0 0.0
    %v623 = vand.u32 %v75, 4294901760
    %624 = vmatpush1.msra.mxu0 %v623
    %625 = vmatprep.subr.mxu0 0.0
    %v626 = vand.u32 %v76, 4294901760
    %627 = vmatpush1.msra.mxu0 %v626
    %628 = vmatprep.subr.mxu0 0.0
    %v629 = vand.u32 %v77, 4294901760
    %630 = vmatpush1.msra.mxu0 %v629
    %631 = vmatprep.subr.mxu0 0.0
    %v632 = vand.u32 %v78, 4294901760
    %633 = vmatpush1.msra.mxu0 %v632
    %634 = vmatprep.subr.mxu0 0.0
    %v635 = vand.u32 %v79, 4294901760
    %636 = vmatpush1.msra.mxu0 %v635
    %637 = vmatprep.subr.mxu0 0.0
    %v638 = vand.u32 %v80, 4294901760
    %639 = vmatpush1.msra.mxu0 %v638
    %640 = vmatprep.subr.mxu0 0.0
    %v641 = vand.u32 %v81, 4294901760
    %642 = vmatpush1.msra.mxu0 %v641
    %643 = vmatprep.subr.mxu0 0.0
    %v644 = vand.u32 %v82, 4294901760
    %645 = vmatpush1.msra.mxu0 %v644
    %646 = vmatprep.subr.mxu0 0.0
    %v647 = vand.u32 %v83, 4294901760
    %648 = vmatpush1.msra.mxu0 %v647
    %649 = vmatprep.subr.mxu0 0.0
    %v650 = vand.u32 %v84, 4294901760
    %651 = vmatpush1.msra.mxu0 %v650
    %652 = vmatprep.subr.mxu0 0.0
    %v653 = vand.u32 %v85, 4294901760
    %654 = vmatpush1.msra.mxu0 %v653
    %655 = vmatprep.subr.mxu0 0.0
    %v656 = vand.u32 %v86, 4294901760
    %657 = vmatpush1.msra.mxu0 %v656
    %658 = vmatprep.subr.mxu0 0.0
    %v659 = vand.u32 %v87, 4294901760
    %660 = vmatpush1.msra.mxu0 %v659
    %661 = vmatprep.subr.mxu0 0.0
    %v662 = vand.u32 %v88, 4294901760
    %663 = vmatpush1.msra.mxu0 %v662
    %664 = vmatprep.subr.mxu0 0.0
    %v665 = vand.u32 %v89, 4294901760
    %666 = vmatpush1.msra.mxu0 %v665
    %667 = vmatprep.subr.mxu0 0.0
    %v668 = vand.u32 %v90, 4294901760
    %669 = vmatpush1.msra.mxu0 %v668
    %670 = vmatprep.subr.mxu0 0.0
    %v671 = vand.u32 %v91, 4294901760
    %672 = vmatpush1.msra.mxu0 %v671
    %673 = vmatprep.subr.mxu0 0.0
    %v674 = vand.u32 %v92, 4294901760
    %675 = vmatpush1.msra.mxu0 %v674
    %676 = vmatprep.subr.mxu0 0.0
    %v677 = vand.u32 %v93, 4294901760
    %678 = vmatpush1.msra.mxu0 %v677
    %v679 = vand.u32 %v61, 4294901760
    %v680 = vsub.f32 %v61, %v679
    %v681 = vand.u32 %v680, 4294901760
    %682 = vmatprep.mubr.f32.mxu0 %v681
    %v683 = vand.u32 %v60, 4294901760
    %v684 = vsub.f32 %v60, %v683
    %v685 = vand.u32 %v684, 4294901760
    %686 = vmatmul.mubr.f32.gmra.mrb[0].mxu0 %v685
    %v687 = vpop.f32.mrb[0].mxu0
    %v688 = vadd.f32 %v580, %v687
    %v689 = vpop.f32.mrb[0].mxu0
    %690 = vdwg.mxu0
    %691 = vmatprep.subr.mxu0 0.0
    %v692 = vand.u32 %v62, 4294901760
    %v693 = vsub.f32 %v62, %v692
    %v694 = vand.u32 %v693, 4294901760
    %695 = vmatpush1.msra.mxu0 %v694
    %696 = vmatprep.subr.mxu0 0.0
    %v697 = vand.u32 %v63, 4294901760
    %v698 = vsub.f32 %v63, %v697
    %v699 = vand.u32 %v698, 4294901760
    %700 = vmatpush1.msra.mxu0 %v699
    %701 = vmatprep.subr.mxu0 0.0
    %v702 = vand.u32 %v64, 4294901760
    %v703 = vsub.f32 %v64, %v702
    %v704 = vand.u32 %v703, 4294901760
    %705 = vmatpush1.msra.mxu0 %v704
    %706 = vmatprep.subr.mxu0 0.0
    %v707 = vand.u32 %v65, 4294901760
    %v708 = vsub.f32 %v65, %v707
    %v709 = vand.u32 %v708, 4294901760
    %710 = vmatpush1.msra.mxu0 %v709
    %711 = vmatprep.subr.mxu0 0.0
    %v712 = vand.u32 %v66, 4294901760
    %v713 = vsub.f32 %v66, %v712
    %v714 = vand.u32 %v713, 4294901760
    %715 = vmatpush1.msra.mxu0 %v714
    %716 = vmatprep.subr.mxu0 0.0
    %v717 = vand.u32 %v67, 4294901760
    %v718 = vsub.f32 %v67, %v717
    %v719 = vand.u32 %v718, 4294901760
    %720 = vmatpush1.msra.mxu0 %v719
    %721 = vmatprep.subr.mxu0 0.0
    %v722 = vand.u32 %v68, 4294901760
    %v723 = vsub.f32 %v68, %v722
    %v724 = vand.u32 %v723, 4294901760
    %725 = vmatpush1.msra.mxu0 %v724
    %726 = vmatprep.subr.mxu0 0.0
    %v727 = vand.u32 %v69, 4294901760
    %v728 = vsub.f32 %v69, %v727
    %v729 = vand.u32 %v728, 4294901760
    %730 = vmatpush1.msra.mxu0 %v729
    %731 = vmatprep.subr.mxu0 0.0
    %v732 = vand.u32 %v70, 4294901760
    %v733 = vsub.f32 %v70, %v732
    %v734 = vand.u32 %v733, 4294901760
    %735 = vmatpush1.msra.mxu0 %v734
    %736 = vmatprep.subr.mxu0 0.0
    %v737 = vand.u32 %v71, 4294901760
    %v738 = vsub.f32 %v71, %v737
    %v739 = vand.u32 %v738, 4294901760
    %740 = vmatpush1.msra.mxu0 %v739
    %741 = vmatprep.subr.mxu0 0.0
    %v742 = vand.u32 %v72, 4294901760
    %v743 = vsub.f32 %v72, %v742
    %v744 = vand.u32 %v743, 4294901760
    %745 = vmatpush1.msra.mxu0 %v744
    %746 = vmatprep.subr.mxu0 0.0
    %v747 = vand.u32 %v73, 4294901760
    %v748 = vsub.f32 %v73, %v747
    %v749 = vand.u32 %v748, 4294901760
    %750 = vmatpush1.msra.mxu0 %v749
    %751 = vmatprep.subr.mxu0 0.0
    %v752 = vand.u32 %v74, 4294901760
    %v753 = vsub.f32 %v74, %v752
    %v754 = vand.u32 %v753, 4294901760
    %755 = vmatpush1.msra.mxu0 %v754
    %756 = vmatprep.subr.mxu0 0.0
    %v757 = vand.u32 %v75, 4294901760
    %v758 = vsub.f32 %v75, %v757
    %v759 = vand.u32 %v758, 4294901760
    %760 = vmatpush1.msra.mxu0 %v759
    %761 = vmatprep.subr.mxu0 0.0
    %v762 = vand.u32 %v76, 4294901760
    %v763 = vsub.f32 %v76, %v762
    %v764 = vand.u32 %v763, 4294901760
    %765 = vmatpush1.msra.mxu0 %v764
    %766 = vmatprep.subr.mxu0 0.0
    %v767 = vand.u32 %v77, 4294901760
    %v768 = vsub.f32 %v77, %v767
    %v769 = vand.u32 %v768, 4294901760
    %770 = vmatpush1.msra.mxu0 %v769
    %771 = vmatprep.subr.mxu0 0.0
    %v772 = vand.u32 %v78, 4294901760
    %v773 = vsub.f32 %v78, %v772
    %v774 = vand.u32 %v773, 4294901760
    %775 = vmatpush1.msra.mxu0 %v774
    %776 = vmatprep.subr.mxu0 0.0
    %v777 = vand.u32 %v79, 4294901760
    %v778 = vsub.f32 %v79, %v777
    %v779 = vand.u32 %v778, 4294901760
    %780 = vmatpush1.msra.mxu0 %v779
    %781 = vmatprep.subr.mxu0 0.0
    %v782 = vand.u32 %v80, 4294901760
    %v783 = vsub.f32 %v80, %v782
    %v784 = vand.u32 %v783, 4294901760
    %785 = vmatpush1.msra.mxu0 %v784
    %786 = vmatprep.subr.mxu0 0.0
    %v787 = vand.u32 %v81, 4294901760
    %v788 = vsub.f32 %v81, %v787
    %v789 = vand.u32 %v788, 4294901760
    %790 = vmatpush1.msra.mxu0 %v789
    %791 = vmatprep.subr.mxu0 0.0
    %v792 = vand.u32 %v82, 4294901760
    %v793 = vsub.f32 %v82, %v792
    %v794 = vand.u32 %v793, 4294901760
    %795 = vmatpush1.msra.mxu0 %v794
    %796 = vmatprep.subr.mxu0 0.0
    %v797 = vand.u32 %v83, 4294901760
    %v798 = vsub.f32 %v83, %v797
    %v799 = vand.u32 %v798, 4294901760
    %800 = vmatpush1.msra.mxu0 %v799
    %801 = vmatprep.subr.mxu0 0.0
    %v802 = vand.u32 %v84, 4294901760
    %v803 = vsub.f32 %v84, %v802
    %v804 = vand.u32 %v803, 4294901760
    %805 = vmatpush1.msra.mxu0 %v804
    %806 = vmatprep.subr.mxu0 0.0
    %v807 = vand.u32 %v85, 4294901760
    %v808 = vsub.f32 %v85, %v807
    %v809 = vand.u32 %v808, 4294901760
    %810 = vmatpush1.msra.mxu0 %v809
    %811 = vmatprep.subr.mxu0 0.0
    %v812 = vand.u32 %v86, 4294901760
    %v813 = vsub.f32 %v86, %v812
    %v814 = vand.u32 %v813, 4294901760
    %815 = vmatpush1.msra.mxu0 %v814
    %816 = vmatprep.subr.mxu0 0.0
    %v817 = vand.u32 %v87, 4294901760
    %v818 = vsub.f32 %v87, %v817
    %v819 = vand.u32 %v818, 4294901760
    %820 = vmatpush1.msra.mxu0 %v819
    %821 = vmatprep.subr.mxu0 0.0
    %v822 = vand.u32 %v88, 4294901760
    %v823 = vsub.f32 %v88, %v822
    %v824 = vand.u32 %v823, 4294901760
    %825 = vmatpush1.msra.mxu0 %v824
    %826 = vmatprep.subr.mxu0 0.0
    %v827 = vand.u32 %v89, 4294901760
    %v828 = vsub.f32 %v89, %v827
    %v829 = vand.u32 %v828, 4294901760
    %830 = vmatpush1.msra.mxu0 %v829
    %831 = vmatprep.subr.mxu0 0.0
    %v832 = vand.u32 %v90, 4294901760
    %v833 = vsub.f32 %v90, %v832
    %v834 = vand.u32 %v833, 4294901760
    %835 = vmatpush1.msra.mxu0 %v834
    %836 = vmatprep.subr.mxu0 0.0
    %v837 = vand.u32 %v91, 4294901760
    %v838 = vsub.f32 %v91, %v837
    %v839 = vand.u32 %v838, 4294901760
    %840 = vmatpush1.msra.mxu0 %v839
    %841 = vmatprep.subr.mxu0 0.0
    %v842 = vand.u32 %v92, 4294901760
    %v843 = vsub.f32 %v92, %v842
    %v844 = vand.u32 %v843, 4294901760
    %845 = vmatpush1.msra.mxu0 %v844
    %846 = vmatprep.subr.mxu0 0.0
    %v847 = vand.u32 %v93, 4294901760
    %v848 = vsub.f32 %v93, %v847
    %v849 = vand.u32 %v848, 4294901760
    %850 = vmatpush1.msra.mxu0 %v849
    %v851 = vand.u32 %v61, 4294901760
    %852 = vmatprep.mubr.f32.mxu0 %v851
    %v853 = vand.u32 %v60, 4294901760
    %854 = vmatmul.mubr.f32.gmra.mrb[0].mxu0 %v853
    %v855 = vpop.f32.mrb[0].mxu0
    %v856 = vadd.f32 %v688, %v855
    %v857 = vpop.f32.mrb[0].mxu0
    %858 = vdwg.mxu0
    %859 = vmatprep.subr.mxu0 0.0
    %v860 = vand.u32 %v62, 4294901760
    %861 = vmatpush1.msra.mxu0 %v860
    %862 = vmatprep.subr.mxu0 0.0
    %v863 = vand.u32 %v63, 4294901760
    %864 = vmatpush1.msra.mxu0 %v863
    %865 = vmatprep.subr.mxu0 0.0
    %v866 = vand.u32 %v64, 4294901760
    %867 = vmatpush1.msra.mxu0 %v866
    %868 = vmatprep.subr.mxu0 0.0
    %v869 = vand.u32 %v65, 4294901760
    %870 = vmatpush1.msra.mxu0 %v869
    %871 = vmatprep.subr.mxu0 0.0
    %v872 = vand.u32 %v66, 4294901760
    %873 = vmatpush1.msra.mxu0 %v872
    %874 = vmatprep.subr.mxu0 0.0
    %v875 = vand.u32 %v67, 4294901760
    %876 = vmatpush1.msra.mxu0 %v875
    %877 = vmatprep.subr.mxu0 0.0
    %v878 = vand.u32 %v68, 4294901760
    %879 = vmatpush1.msra.mxu0 %v878
    %880 = vmatprep.subr.mxu0 0.0
    %v881 = vand.u32 %v69, 4294901760
    %882 = vmatpush1.msra.mxu0 %v881
    %883 = vmatprep.subr.mxu0 0.0
    %v884 = vand.u32 %v70, 4294901760
    %885 = vmatpush1.msra.mxu0 %v884
    %886 = vmatprep.subr.mxu0 0.0
    %v887 = vand.u32 %v71, 4294901760
    %888 = vmatpush1.msra.mxu0 %v887
    %889 = vmatprep.subr.mxu0 0.0
    %v890 = vand.u32 %v72, 4294901760
    %891 = vmatpush1.msra.mxu0 %v890
    %892 = vmatprep.subr.mxu0 0.0
    %v893 = vand.u32 %v73, 4294901760
    %894 = vmatpush1.msra.mxu0 %v893
    %895 = vmatprep.subr.mxu0 0.0
    %v896 = vand.u32 %v74, 4294901760
    %897 = vmatpush1.msra.mxu0 %v896
    %898 = vmatprep.subr.mxu0 0.0
    %v899 = vand.u32 %v75, 4294901760
    %900 = vmatpush1.msra.mxu0 %v899
    %901 = vmatprep.subr.mxu0 0.0
    %v902 = vand.u32 %v76, 4294901760
    %903 = vmatpush1.msra.mxu0 %v902
    %904 = vmatprep.subr.mxu0 0.0
    %v905 = vand.u32 %v77, 4294901760
    %906 = vmatpush1.msra.mxu0 %v905
    %907 = vmatprep.subr.mxu0 0.0
    %v908 = vand.u32 %v78, 4294901760
    %909 = vmatpush1.msra.mxu0 %v908
    %910 = vmatprep.subr.mxu0 0.0
    %v911 = vand.u32 %v79, 4294901760
    %912 = vmatpush1.msra.mxu0 %v911
    %913 = vmatprep.subr.mxu0 0.0
    %v914 = vand.u32 %v80, 4294901760
    %915 = vmatpush1.msra.mxu0 %v914
    %916 = vmatprep.subr.mxu0 0.0
    %v917 = vand.u32 %v81, 4294901760
    %918 = vmatpush1.msra.mxu0 %v917
    %919 = vmatprep.subr.mxu0 0.0
    %v920 = vand.u32 %v82, 4294901760
    %921 = vmatpush1.msra.mxu0 %v920
    %922 = vmatprep.subr.mxu0 0.0
    %v923 = vand.u32 %v83, 4294901760
    %924 = vmatpush1.msra.mxu0 %v923
    %925 = vmatprep.subr.mxu0 0.0
    %v926 = vand.u32 %v84, 4294901760
    %927 = vmatpush1.msra.mxu0 %v926
    %928 = vmatprep.subr.mxu0 0.0
    %v929 = vand.u32 %v85, 4294901760
    %930 = vmatpush1.msra.mxu0 %v929
    %931 = vmatprep.subr.mxu0 0.0
    %v932 = vand.u32 %v86, 4294901760
    %933 = vmatpush1.msra.mxu0 %v932
    %934 = vmatprep.subr.mxu0 0.0
    %v935 = vand.u32 %v87, 4294901760
    %936 = vmatpush1.msra.mxu0 %v935
    %937 = vmatprep.subr.mxu0 0.0
    %v938 = vand.u32 %v88, 4294901760
    %939 = vmatpush1.msra.mxu0 %v938
    %940 = vmatprep.subr.mxu0 0.0
    %v941 = vand.u32 %v89, 4294901760
    %942 = vmatpush1.msra.mxu0 %v941
    %943 = vmatprep.subr.mxu0 0.0
    %v944 = vand.u32 %v90, 4294901760
    %945 = vmatpush1.msra.mxu0 %v944
    %946 = vmatprep.subr.mxu0 0.0
    %v947 = vand.u32 %v91, 4294901760
    %948 = vmatpush1.msra.mxu0 %v947
    %949 = vmatprep.subr.mxu0 0.0
    %v950 = vand.u32 %v92, 4294901760
    %951 = vmatpush1.msra.mxu0 %v950
    %952 = vmatprep.subr.mxu0 0.0
    %v953 = vand.u32 %v93, 4294901760
    %954 = vmatpush1.msra.mxu0 %v953
    %v955 = vand.u32 %v61, 4294901760
    %956 = vmatprep.mubr.f32.mxu0 %v955
    %v957 = vand.u32 %v60, 4294901760
    %958 = vmatmul.mubr.f32.gmra.mrb[0].mxu0 %v957
    %v959 = vpop.f32.mrb[0].mxu0
    %v960 = vadd.f32 %v856, %v959
    %v961 = vpop.f32.mrb[0].mxu0
    %962 = vdwg.mxu0
    %v963 = vmax.f32 %v960, 0.0
    %v964 = vld [vmem:[#allocation7] sm:$0xff]
    %v965 = vld [vmem:[#allocation7 + $0x8] sm:$0xff]
    %v966 = vld [vmem:[#allocation7 + $0x10] sm:$0xff]
    %v967 = vld [vmem:[#allocation7 + $0x18] sm:$0xff]
    %v968 = vld [vmem:[#allocation7 + $0x20] sm:$0xff]
    %v969 = vld [vmem:[#allocation7 + $0x28] sm:$0xff]
    %v970 = vld [vmem:[#allocation7 + $0x30] sm:$0xff]
    %v971 = vld [vmem:[#allocation7 + $0x38] sm:$0xff]
    %v972 = vld [vmem:[#allocation7 + $0x40] sm:$0xff]
    %v973 = vld [vmem:[#allocation7 + $0x48] sm:$0xff]
    %v974 = vld [vmem:[#allocation7 + $0x50] sm:$0xff]
    %v975 = vld [vmem:[#allocation7 + $0x58] sm:$0xff]
    %v976 = vld [vmem:[#allocation7 + $0x60] sm:$0xff]
    %v977 = vld [vmem:[#allocation7 + $0x68] sm:$0xff]
    %v978 = vld [vmem:[#allocation7 + $0x70] sm:$0xff]
    %v979 = vld [vmem:[#allocation7 + $0x78] sm:$0xff]
    %v980 = vld [vmem:[#allocation7 + $0x80] sm:$0xff]
    %v981 = vld [vmem:[#allocation7 + $0x88] sm:$0xff]
    %v982 = vld [vmem:[#allocation7 + $0x90] sm:$0xff]
    %v983 = vld [vmem:[#allocation7 + $0x98] sm:$0xff]
    %v984 = vld [vmem:[#allocation7 + $0xa0] sm:$0xff]
    %v985 = vld [vmem:[#allocation7 + $0xa8] sm:$0xff]
    %v986 = vld [vmem:[#allocation7 + $0xb0] sm:$0xff]
    %v987 = vld [vmem:[#allocation7 + $0xb8] sm:$0xff]
    %v988 = vld [vmem:[#allocation7 + $0xc0] sm:$0xff]
    %v989 = vld [vmem:[#allocation7 + $0xc8] sm:$0xff]
    %v990 = vld [vmem:[#allocation7 + $0xd0] sm:$0xff]
    %v991 = vld [vmem:[#allocation7 + $0xd8] sm:$0xff]
    %v992 = vld [vmem:[#allocation7 + $0xe0] sm:$0xff]
    %v993 = vld [vmem:[#allocation7 + $0xe8] sm:$0xff]
    %v994 = vld [vmem:[#allocation7 + $0xf0] sm:$0xff]
    %v995 = vld [vmem:[#allocation7 + $0xf8] sm:$0xff]
    %v996 = vld [vmem:[%s4] sm:$0x3]
    %v998 = vlaneseq
    %v999 = vshrl.u32 %v998, 7
    %v1000 = vsub.s32 0, %v999
    %v1001 = vrot.slane %v996, %v1000
    %v1002 = vlaneseq
    %v1003 = vshrl.u32 %v1002, 7
    %v1004 = vsub.s32 1, %v1003
    %v1005 = vrot.slane %v996, %v1004
    %v1008 = vand.u32 %v965, 4294901760
    %1009 = vmatprep.subr.mxu0 %v1008
    %v1010 = vand.u32 %v964, 4294901760
    %1011 = vmatpush1.msra.mxu0 %v1010
    %v1012 = vand.u32 %v967, 4294901760
    %1013 = vmatprep.subr.mxu0 %v1012
    %v1014 = vand.u32 %v966, 4294901760
    %1015 = vmatpush1.msra.mxu0 %v1014
    %v1016 = vand.u32 %v969, 4294901760
    %1017 = vmatprep.subr.mxu0 %v1016
    %v1018 = vand.u32 %v968, 4294901760
    %1019 = vmatpush1.msra.mxu0 %v1018
    %v1020 = vand.u32 %v971, 4294901760
    %1021 = vmatprep.subr.mxu0 %v1020
    %v1022 = vand.u32 %v970, 4294901760
    %1023 = vmatpush1.msra.mxu0 %v1022
    %v1024 = vand.u32 %v973, 4294901760
    %1025 = vmatprep.subr.mxu0 %v1024
    %v1026 = vand.u32 %v972, 4294901760
    %1027 = vmatpush1.msra.mxu0 %v1026
    %v1028 = vand.u32 %v975, 4294901760
    %1029 = vmatprep.subr.mxu0 %v1028
    %v1030 = vand.u32 %v974, 4294901760
    %1031 = vmatpush1.msra.mxu0 %v1030
    %v1032 = vand.u32 %v977, 4294901760
    %1033 = vmatprep.subr.mxu0 %v1032
    %v1034 = vand.u32 %v976, 4294901760
    %1035 = vmatpush1.msra.mxu0 %v1034
    %v1036 = vand.u32 %v979, 4294901760
    %1037 = vmatprep.subr.mxu0 %v1036
    %v1038 = vand.u32 %v978, 4294901760
    %1039 = vmatpush1.msra.mxu0 %v1038
    %v1040 = vand.u32 %v981, 4294901760
    %1041 = vmatprep.subr.mxu0 %v1040
    %v1042 = vand.u32 %v980, 4294901760
    %1043 = vmatpush1.msra.mxu0 %v1042
    %v1044 = vand.u32 %v983, 4294901760
    %1045 = vmatprep.subr.mxu0 %v1044
    %v1046 = vand.u32 %v982, 4294901760
    %1047 = vmatpush1.msra.mxu0 %v1046
    %v1048 = vand.u32 %v985, 4294901760
    %1049 = vmatprep.subr.mxu0 %v1048
    %v1050 = vand.u32 %v984, 4294901760
    %1051 = vmatpush1.msra.mxu0 %v1050
    %v1052 = vand.u32 %v987, 4294901760
    %1053 = vmatprep.subr.mxu0 %v1052
    %v1054 = vand.u32 %v986, 4294901760
    %1055 = vmatpush1.msra.mxu0 %v1054
    %v1056 = vand.u32 %v989, 4294901760
    %1057 = vmatprep.subr.mxu0 %v1056
    %v1058 = vand.u32 %v988, 4294901760
    %1059 = vmatpush1.msra.mxu0 %v1058
    %v1060 = vand.u32 %v991, 4294901760
    %1061 = vmatprep.subr.mxu0 %v1060
    %v1062 = vand.u32 %v990, 4294901760
    %1063 = vmatpush1.msra.mxu0 %v1062
    %v1064 = vand.u32 %v993, 4294901760
    %1065 = vmatprep.subr.mxu0 %v1064
    %v1066 = vand.u32 %v992, 4294901760
    %1067 = vmatpush1.msra.mxu0 %v1066
    %v1068 = vand.u32 %v995, 4294901760
    %1069 = vmatprep.subr.mxu0 %v1068
    %v1070 = vand.u32 %v994, 4294901760
    %1071 = vmatpush1.msra.mxu0 %v1070
    %1072 = vmatprep.subr.mxu0 0.0
    %1073 = vmatpush1.msra.mxu0 0.0
    %1074 = vmatprep.subr.mxu0 0.0
    %1075 = vmatpush1.msra.mxu0 0.0
    %1076 = vmatprep.subr.mxu0 0.0
    %1077 = vmatpush1.msra.mxu0 0.0
    %1078 = vmatprep.subr.mxu0 0.0
    %1079 = vmatpush1.msra.mxu0 0.0
    %1080 = vmatprep.subr.mxu0 0.0
    %1081 = vmatpush1.msra.mxu0 0.0
    %1082 = vmatprep.subr.mxu0 0.0
    %1083 = vmatpush1.msra.mxu0 0.0
    %1084 = vmatprep.subr.mxu0 0.0
    %1085 = vmatpush1.msra.mxu0 0.0
    %1086 = vmatprep.subr.mxu0 0.0
    %1087 = vmatpush1.msra.mxu0 0.0
    %1088 = vmatprep.subr.mxu0 0.0
    %1089 = vmatpush1.msra.mxu0 0.0
    %1090 = vmatprep.subr.mxu0 0.0
    %1091 = vmatpush1.msra.mxu0 0.0
    %1092 = vmatprep.subr.mxu0 0.0
    %1093 = vmatpush1.msra.mxu0 0.0
    %1094 = vmatprep.subr.mxu0 0.0
    %1095 = vmatpush1.msra.mxu0 0.0
    %1096 = vmatprep.subr.mxu0 0.0
    %1097 = vmatpush1.msra.mxu0 0.0
    %1098 = vmatprep.subr.mxu0 0.0
    %1099 = vmatpush1.msra.mxu0 0.0
    %1100 = vmatprep.subr.mxu0 0.0
    %1101 = vmatpush1.msra.mxu0 0.0
    %1102 = vmatprep.subr.mxu0 0.0
    %1103 = vmatpush1.msra.mxu0 0.0
    %1104 = vmatprep.mubr.f32.mxu0 0.0
    %v1105 = vand.u32 %v963, 4294901760
    %v1106 = vsub.f32 %v963, %v1105
    %v1107 = vand.u32 %v1106, 4294901760
    %v1108 = vsub.f32 %v1106, %v1107
    %v1109 = vand.u32 %v1108, 4294901760
    %1110 = vmatmul.mubr.f32.gmra.mrb[0].mxu0 %v1109
    %v1111 = vpop.f32.mrb[0].mxu0
    %v1112 = vadd.f32 %v1001, %v1111
    %v1113 = vpop.f32.mrb[0].mxu0
    %v1114 = vadd.f32 %v1005, %v1113
    %1115 = vdwg.mxu0
    %v1116 = vand.u32 %v965, 4294901760
    %v1117 = vsub.f32 %v965, %v1116
    %v1118 = vand.u32 %v1117, 4294901760
    %v1119 = vsub.f32 %v1117, %v1118
    %v1120 = vand.u32 %v1119, 4294901760
    %1121 = vmatprep.subr.mxu0 %v1120
    %v1122 = vand.u32 %v964, 4294901760
    %v1123 = vsub.f32 %v964, %v1122
    %v1124 = vand.u32 %v1123, 4294901760
    %v1125 = vsub.f32 %v1123, %v1124
    %v1126 = vand.u32 %v1125, 4294901760
    %1127 = vmatpush1.msra.mxu0 %v1126
    %v1128 = vand.u32 %v967, 4294901760
    %v1129 = vsub.f32 %v967, %v1128
    %v1130 = vand.u32 %v1129, 4294901760
    %v1131 = vsub.f32 %v1129, %v1130
    %v1132 = vand.u32 %v1131, 4294901760
    %1133 = vmatprep.subr.mxu0 %v1132
    %v1134 = vand.u32 %v966, 4294901760
    %v1135 = vsub.f32 %v966, %v1134
    %v1136 = vand.u32 %v1135, 4294901760
    %v1137 = vsub.f32 %v1135, %v1136
    %v1138 = vand.u32 %v1137, 4294901760
    %1139 = vmatpush1.msra.mxu0 %v1138
    %v1140 = vand.u32 %v969, 4294901760
    %v1141 = vsub.f32 %v969, %v1140
    %v1142 = vand.u32 %v1141, 4294901760
    %v1143 = vsub.f32 %v1141, %v1142
    %v1144 = vand.u32 %v1143, 4294901760
    %1145 = vmatprep.subr.mxu0 %v1144
    %v1146 = vand.u32 %v968, 4294901760
    %v1147 = vsub.f32 %v968, %v1146
    %v1148 = vand.u32 %v1147, 4294901760
    %v1149 = vsub.f32 %v1147, %v1148
    %v1150 = vand.u32 %v1149, 4294901760
    %1151 = vmatpush1.msra.mxu0 %v1150
    %v1152 = vand.u32 %v971, 4294901760
    %v1153 = vsub.f32 %v971, %v1152
    %v1154 = vand.u32 %v1153, 4294901760
    %v1155 = vsub.f32 %v1153, %v1154
    %v1156 = vand.u32 %v1155, 4294901760
    %1157 = vmatprep.subr.mxu0 %v1156
    %v1158 = vand.u32 %v970, 4294901760
    %v1159 = vsub.f32 %v970, %v1158
    %v1160 = vand.u32 %v1159, 4294901760
    %v1161 = vsub.f32 %v1159, %v1160
    %v1162 = vand.u32 %v1161, 4294901760
    %1163 = vmatpush1.msra.mxu0 %v1162
    %v1164 = vand.u32 %v973, 4294901760
    %v1165 = vsub.f32 %v973, %v1164
    %v1166 = vand.u32 %v1165, 4294901760
    %v1167 = vsub.f32 %v1165, %v1166
    %v1168 = vand.u32 %v1167, 4294901760
    %1169 = vmatprep.subr.mxu0 %v1168
    %v1170 = vand.u32 %v972, 4294901760
    %v1171 = vsub.f32 %v972, %v1170
    %v1172 = vand.u32 %v1171, 4294901760
    %v1173 = vsub.f32 %v1171, %v1172
    %v1174 = vand.u32 %v1173, 4294901760
    %1175 = vmatpush1.msra.mxu0 %v1174
    %v1176 = vand.u32 %v975, 4294901760
    %v1177 = vsub.f32 %v975, %v1176
    %v1178 = vand.u32 %v1177, 4294901760
    %v1179 = vsub.f32 %v1177, %v1178
    %v1180 = vand.u32 %v1179, 4294901760
    %1181 = vmatprep.subr.mxu0 %v1180
    %v1182 = vand.u32 %v974, 4294901760
    %v1183 = vsub.f32 %v974, %v1182
    %v1184 = vand.u32 %v1183, 4294901760
    %v1185 = vsub.f32 %v1183, %v1184
    %v1186 = vand.u32 %v1185, 4294901760
    %1187 = vmatpush1.msra.mxu0 %v1186
    %v1188 = vand.u32 %v977, 4294901760
    %v1189 = vsub.f32 %v977, %v1188
    %v1190 = vand.u32 %v1189, 4294901760
    %v1191 = vsub.f32 %v1189, %v1190
    %v1192 = vand.u32 %v1191, 4294901760
    %1193 = vmatprep.subr.mxu0 %v1192
    %v1194 = vand.u32 %v976, 4294901760
    %v1195 = vsub.f32 %v976, %v1194
    %v1196 = vand.u32 %v1195, 4294901760
    %v1197 = vsub.f32 %v1195, %v1196
    %v1198 = vand.u32 %v1197, 4294901760
    %1199 = vmatpush1.msra.mxu0 %v1198
    %v1200 = vand.u32 %v979, 4294901760
    %v1201 = vsub.f32 %v979, %v1200
    %v1202 = vand.u32 %v1201, 4294901760
    %v1203 = vsub.f32 %v1201, %v1202
    %v1204 = vand.u32 %v1203, 4294901760
    %1205 = vmatprep.subr.mxu0 %v1204
    %v1206 = vand.u32 %v978, 4294901760
    %v1207 = vsub.f32 %v978, %v1206
    %v1208 = vand.u32 %v1207, 4294901760
    %v1209 = vsub.f32 %v1207, %v1208
    %v1210 = vand.u32 %v1209, 4294901760
    %1211 = vmatpush1.msra.mxu0 %v1210
    %v1212 = vand.u32 %v981, 4294901760
    %v1213 = vsub.f32 %v981, %v1212
    %v1214 = vand.u32 %v1213, 4294901760
    %v1215 = vsub.f32 %v1213, %v1214
    %v1216 = vand.u32 %v1215, 4294901760
    %1217 = vmatprep.subr.mxu0 %v1216
    %v1218 = vand.u32 %v980, 4294901760
    %v1219 = vsub.f32 %v980, %v1218
    %v1220 = vand.u32 %v1219, 4294901760
    %v1221 = vsub.f32 %v1219, %v1220
    %v1222 = vand.u32 %v1221, 4294901760
    %1223 = vmatpush1.msra.mxu0 %v1222
    %v1224 = vand.u32 %v983, 4294901760
    %v1225 = vsub.f32 %v983, %v1224
    %v1226 = vand.u32 %v1225, 4294901760
    %v1227 = vsub.f32 %v1225, %v1226
    %v1228 = vand.u32 %v1227, 4294901760
    %1229 = vmatprep.subr.mxu0 %v1228
    %v1230 = vand.u32 %v982, 4294901760
    %v1231 = vsub.f32 %v982, %v1230
    %v1232 = vand.u32 %v1231, 4294901760
    %v1233 = vsub.f32 %v1231, %v1232
    %v1234 = vand.u32 %v1233, 4294901760
    %1235 = vmatpush1.msra.mxu0 %v1234
    %v1236 = vand.u32 %v985, 4294901760
    %v1237 = vsub.f32 %v985, %v1236
    %v1238 = vand.u32 %v1237, 4294901760
    %v1239 = vsub.f32 %v1237, %v1238
    %v1240 = vand.u32 %v1239, 4294901760
    %1241 = vmatprep.subr.mxu0 %v1240
    %v1242 = vand.u32 %v984, 4294901760
    %v1243 = vsub.f32 %v984, %v1242
    %v1244 = vand.u32 %v1243, 4294901760
    %v1245 = vsub.f32 %v1243, %v1244
    %v1246 = vand.u32 %v1245, 4294901760
    %1247 = vmatpush1.msra.mxu0 %v1246
    %v1248 = vand.u32 %v987, 4294901760
    %v1249 = vsub.f32 %v987, %v1248
    %v1250 = vand.u32 %v1249, 4294901760
    %v1251 = vsub.f32 %v1249, %v1250
    %v1252 = vand.u32 %v1251, 4294901760
    %1253 = vmatprep.subr.mxu0 %v1252
    %v1254 = vand.u32 %v986, 4294901760
    %v1255 = vsub.f32 %v986, %v1254
    %v1256 = vand.u32 %v1255, 4294901760
    %v1257 = vsub.f32 %v1255, %v1256
    %v1258 = vand.u32 %v1257, 4294901760
    %1259 = vmatpush1.msra.mxu0 %v1258
    %v1260 = vand.u32 %v989, 4294901760
    %v1261 = vsub.f32 %v989, %v1260
    %v1262 = vand.u32 %v1261, 4294901760
    %v1263 = vsub.f32 %v1261, %v1262
    %v1264 = vand.u32 %v1263, 4294901760
    %1265 = vmatprep.subr.mxu0 %v1264
    %v1266 = vand.u32 %v988, 4294901760
    %v1267 = vsub.f32 %v988, %v1266
    %v1268 = vand.u32 %v1267, 4294901760
    %v1269 = vsub.f32 %v1267, %v1268
    %v1270 = vand.u32 %v1269, 4294901760
    %1271 = vmatpush1.msra.mxu0 %v1270
    %v1272 = vand.u32 %v991, 4294901760
    %v1273 = vsub.f32 %v991, %v1272
    %v1274 = vand.u32 %v1273, 4294901760
    %v1275 = vsub.f32 %v1273, %v1274
    %v1276 = vand.u32 %v1275, 4294901760
    %1277 = vmatprep.subr.mxu0 %v1276
    %v1278 = vand.u32 %v990, 4294901760
    %v1279 = vsub.f32 %v990, %v1278
    %v1280 = vand.u32 %v1279, 4294901760
    %v1281 = vsub.f32 %v1279, %v1280
    %v1282 = vand.u32 %v1281, 4294901760
    %1283 = vmatpush1.msra.mxu0 %v1282
    %v1284 = vand.u32 %v993, 4294901760
    %v1285 = vsub.f32 %v993, %v1284
    %v1286 = vand.u32 %v1285, 4294901760
    %v1287 = vsub.f32 %v1285, %v1286
    %v1288 = vand.u32 %v1287, 4294901760
    %1289 = vmatprep.subr.mxu0 %v1288
    %v1290 = vand.u32 %v992, 4294901760
    %v1291 = vsub.f32 %v992, %v1290
    %v1292 = vand.u32 %v1291, 4294901760
    %v1293 = vsub.f32 %v1291, %v1292
    %v1294 = vand.u32 %v1293, 4294901760
    %1295 = vmatpush1.msra.mxu0 %v1294
    %v1296 = vand.u32 %v995, 4294901760
    %v1297 = vsub.f32 %v995, %v1296
    %v1298 = vand.u32 %v1297, 4294901760
    %v1299 = vsub.f32 %v1297, %v1298
    %v1300 = vand.u32 %v1299, 4294901760
    %1301 = vmatprep.subr.mxu0 %v1300
    %v1302 = vand.u32 %v994, 4294901760
    %v1303 = vsub.f32 %v994, %v1302
    %v1304 = vand.u32 %v1303, 4294901760
    %v1305 = vsub.f32 %v1303, %v1304
    %v1306 = vand.u32 %v1305, 4294901760
    %1307 = vmatpush1.msra.mxu0 %v1306
    %1308 = vmatprep.subr.mxu0 0.0
    %1309 = vmatpush1.msra.mxu0 0.0
    %1310 = vmatprep.subr.mxu0 0.0
    %1311 = vmatpush1.msra.mxu0 0.0
    %1312 = vmatprep.subr.mxu0 0.0
    %1313 = vmatpush1.msra.mxu0 0.0
    %1314 = vmatprep.subr.mxu0 0.0
    %1315 = vmatpush1.msra.mxu0 0.0
    %1316 = vmatprep.subr.mxu0 0.0
    %1317 = vmatpush1.msra.mxu0 0.0
    %1318 = vmatprep.subr.mxu0 0.0
    %1319 = vmatpush1.msra.mxu0 0.0
    %1320 = vmatprep.subr.mxu0 0.0
    %1321 = vmatpush1.msra.mxu0 0.0
    %1322 = vmatprep.subr.mxu0 0.0
    %1323 = vmatpush1.msra.mxu0 0.0
    %1324 = vmatprep.subr.mxu0 0.0
    %1325 = vmatpush1.msra.mxu0 0.0
    %1326 = vmatprep.subr.mxu0 0.0
    %1327 = vmatpush1.msra.mxu0 0.0
    %1328 = vmatprep.subr.mxu0 0.0
    %1329 = vmatpush1.msra.mxu0 0.0
    %1330 = vmatprep.subr.mxu0 0.0
    %1331 = vmatpush1.msra.mxu0 0.0
    %1332 = vmatprep.subr.mxu0 0.0
    %1333 = vmatpush1.msra.mxu0 0.0
    %1334 = vmatprep.subr.mxu0 0.0
    %1335 = vmatpush1.msra.mxu0 0.0
    %1336 = vmatprep.subr.mxu0 0.0
    %1337 = vmatpush1.msra.mxu0 0.0
    %1338 = vmatprep.subr.mxu0 0.0
    %1339 = vmatpush1.msra.mxu0 0.0
    %1340 = vmatprep.mubr.f32.mxu0 0.0
    %v1341 = vand.u32 %v963, 4294901760
    %1342 = vmatmul.mubr.f32.gmra.mrb[0].mxu0 %v1341
    %v1343 = vpop.f32.mrb[0].mxu0
    %v1344 = vadd.f32 %v1112, %v1343
    %v1345 = vpop.f32.mrb[0].mxu0
    %v1346 = vadd.f32 %v1114, %v1345
    %1347 = vdwg.mxu0
    %v1348 = vand.u32 %v965, 4294901760
    %v1349 = vsub.f32 %v965, %v1348
    %1350 = vmatprep.subr.mxu0 %v1349
    %v1351 = vand.u32 %v964, 4294901760
    %v1352 = vsub.f32 %v964, %v1351
    %1353 = vmatpush1.msra.mxu0 %v1352
    %v1354 = vand.u32 %v967, 4294901760
    %v1355 = vsub.f32 %v967, %v1354
    %1356 = vmatprep.subr.mxu0 %v1355
    %v1357 = vand.u32 %v966, 4294901760
    %v1358 = vsub.f32 %v966, %v1357
    %1359 = vmatpush1.msra.mxu0 %v1358
    %v1360 = vand.u32 %v969, 4294901760
    %v1361 = vsub.f32 %v969, %v1360
    %1362 = vmatprep.subr.mxu0 %v1361
    %v1363 = vand.u32 %v968, 4294901760
    %v1364 = vsub.f32 %v968, %v1363
    %1365 = vmatpush1.msra.mxu0 %v1364
    %v1366 = vand.u32 %v971, 4294901760
    %v1367 = vsub.f32 %v971, %v1366
    %1368 = vmatprep.subr.mxu0 %v1367
    %v1369 = vand.u32 %v970, 4294901760
    %v1370 = vsub.f32 %v970, %v1369
    %1371 = vmatpush1.msra.mxu0 %v1370
    %v1372 = vand.u32 %v973, 4294901760
    %v1373 = vsub.f32 %v973, %v1372
    %1374 = vmatprep.subr.mxu0 %v1373
    %v1375 = vand.u32 %v972, 4294901760
    %v1376 = vsub.f32 %v972, %v1375
    %1377 = vmatpush1.msra.mxu0 %v1376
    %v1378 = vand.u32 %v975, 4294901760
    %v1379 = vsub.f32 %v975, %v1378
    %1380 = vmatprep.subr.mxu0 %v1379
    %v1381 = vand.u32 %v974, 4294901760
    %v1382 = vsub.f32 %v974, %v1381
    %1383 = vmatpush1.msra.mxu0 %v1382
    %v1384 = vand.u32 %v977, 4294901760
    %v1385 = vsub.f32 %v977, %v1384
    %1386 = vmatprep.subr.mxu0 %v1385
    %v1387 = vand.u32 %v976, 4294901760
    %v1388 = vsub.f32 %v976, %v1387
    %1389 = vmatpush1.msra.mxu0 %v1388
    %v1390 = vand.u32 %v979, 4294901760
    %v1391 = vsub.f32 %v979, %v1390
    %1392 = vmatprep.subr.mxu0 %v1391
    %v1393 = vand.u32 %v978, 4294901760
    %v1394 = vsub.f32 %v978, %v1393
    %1395 = vmatpush1.msra.mxu0 %v1394
    %v1396 = vand.u32 %v981, 4294901760
    %v1397 = vsub.f32 %v981, %v1396
    %1398 = vmatprep.subr.mxu0 %v1397
    %v1399 = vand.u32 %v980, 4294901760
    %v1400 = vsub.f32 %v980, %v1399
    %1401 = vmatpush1.msra.mxu0 %v1400
    %v1402 = vand.u32 %v983, 4294901760
    %v1403 = vsub.f32 %v983, %v1402
    %1404 = vmatprep.subr.mxu0 %v1403
    %v1405 = vand.u32 %v982, 4294901760
    %v1406 = vsub.f32 %v982, %v1405
    %1407 = vmatpush1.msra.mxu0 %v1406
    %v1408 = vand.u32 %v985, 4294901760
    %v1409 = vsub.f32 %v985, %v1408
    %1410 = vmatprep.subr.mxu0 %v1409
    %v1411 = vand.u32 %v984, 4294901760
    %v1412 = vsub.f32 %v984, %v1411
    %1413 = vmatpush1.msra.mxu0 %v1412
    %v1414 = vand.u32 %v987, 4294901760
    %v1415 = vsub.f32 %v987, %v1414
    %1416 = vmatprep.subr.mxu0 %v1415
    %v1417 = vand.u32 %v986, 4294901760
    %v1418 = vsub.f32 %v986, %v1417
    %1419 = vmatpush1.msra.mxu0 %v1418
    %v1420 = vand.u32 %v989, 4294901760
    %v1421 = vsub.f32 %v989, %v1420
    %1422 = vmatprep.subr.mxu0 %v1421
    %v1423 = vand.u32 %v988, 4294901760
    %v1424 = vsub.f32 %v988, %v1423
    %1425 = vmatpush1.msra.mxu0 %v1424
    %v1426 = vand.u32 %v991, 4294901760
    %v1427 = vsub.f32 %v991, %v1426
    %1428 = vmatprep.subr.mxu0 %v1427
    %v1429 = vand.u32 %v990, 4294901760
    %v1430 = vsub.f32 %v990, %v1429
    %1431 = vmatpush1.msra.mxu0 %v1430
    %v1432 = vand.u32 %v993, 4294901760
    %v1433 = vsub.f32 %v993, %v1432
    %1434 = vmatprep.subr.mxu0 %v1433
    %v1435 = vand.u32 %v992, 4294901760
    %v1436 = vsub.f32 %v992, %v1435
    %1437 = vmatpush1.msra.mxu0 %v1436
    %v1438 = vand.u32 %v995, 4294901760
    %v1439 = vsub.f32 %v995, %v1438
    %1440 = vmatprep.subr.mxu0 %v1439
    %v1441 = vand.u32 %v994, 4294901760
    %v1442 = vsub.f32 %v994, %v1441
    %1443 = vmatpush1.msra.mxu0 %v1442
    %1444 = vmatprep.subr.mxu0 0.0
    %1445 = vmatpush1.msra.mxu0 0.0
    %1446 = vmatprep.subr.mxu0 0.0
    %1447 = vmatpush1.msra.mxu0 0.0
    %1448 = vmatprep.subr.mxu0 0.0
    %1449 = vmatpush1.msra.mxu0 0.0
    %1450 = vmatprep.subr.mxu0 0.0
    %1451 = vmatpush1.msra.mxu0 0.0
    %1452 = vmatprep.subr.mxu0 0.0
    %1453 = vmatpush1.msra.mxu0 0.0
    %1454 = vmatprep.subr.mxu0 0.0
    %1455 = vmatpush1.msra.mxu0 0.0
    %1456 = vmatprep.subr.mxu0 0.0
    %1457 = vmatpush1.msra.mxu0 0.0
    %1458 = vmatprep.subr.mxu0 0.0
    %1459 = vmatpush1.msra.mxu0 0.0
    %1460 = vmatprep.subr.mxu0 0.0
    %1461 = vmatpush1.msra.mxu0 0.0
    %1462 = vmatprep.subr.mxu0 0.0
    %1463 = vmatpush1.msra.mxu0 0.0
    %1464 = vmatprep.subr.mxu0 0.0
    %1465 = vmatpush1.msra.mxu0 0.0
    %1466 = vmatprep.subr.mxu0 0.0
    %1467 = vmatpush1.msra.mxu0 0.0
    %1468 = vmatprep.subr.mxu0 0.0
    %1469 = vmatpush1.msra.mxu0 0.0
    %1470 = vmatprep.subr.mxu0 0.0
    %1471 = vmatpush1.msra.mxu0 0.0
    %1472 = vmatprep.subr.mxu0 0.0
    %1473 = vmatpush1.msra.mxu0 0.0
    %1474 = vmatprep.subr.mxu0 0.0
    %1475 = vmatpush1.msra.mxu0 0.0
    %1476 = vmatprep.mubr.f32.mxu0 0.0
    %v1477 = vand.u32 %v963, 4294901760
    %v1478 = vsub.f32 %v963, %v1477
    %1479 = vmatmul.mubr.f32.gmra.mrb[0].mxu0 %v1478
    %v1480 = vpop.f32.mrb[0].mxu0
    %v1481 = vadd.f32 %v1344, %v1480
    %v1482 = vpop.f32.mrb[0].mxu0
    %v1483 = vadd.f32 %v1346, %v1482
    %1484 = vdwg.mxu0
    %v1485 = vand.u32 %v965, 4294901760
    %1486 = vmatprep.subr.mxu0 %v1485
    %v1487 = vand.u32 %v964, 4294901760
    %1488 = vmatpush1.msra.mxu0 %v1487
    %v1489 = vand.u32 %v967, 4294901760
    %1490 = vmatprep.subr.mxu0 %v1489
    %v1491 = vand.u32 %v966, 4294901760
    %1492 = vmatpush1.msra.mxu0 %v1491
    %v1493 = vand.u32 %v969, 4294901760
    %1494 = vmatprep.subr.mxu0 %v1493
    %v1495 = vand.u32 %v968, 4294901760
    %1496 = vmatpush1.msra.mxu0 %v1495
    %v1497 = vand.u32 %v971, 4294901760
    %1498 = vmatprep.subr.mxu0 %v1497
    %v1499 = vand.u32 %v970, 4294901760
    %1500 = vmatpush1.msra.mxu0 %v1499
    %v1501 = vand.u32 %v973, 4294901760
    %1502 = vmatprep.subr.mxu0 %v1501
    %v1503 = vand.u32 %v972, 4294901760
    %1504 = vmatpush1.msra.mxu0 %v1503
    %v1505 = vand.u32 %v975, 4294901760
    %1506 = vmatprep.subr.mxu0 %v1505
    %v1507 = vand.u32 %v974, 4294901760
    %1508 = vmatpush1.msra.mxu0 %v1507
    %v1509 = vand.u32 %v977, 4294901760
    %1510 = vmatprep.subr.mxu0 %v1509
    %v1511 = vand.u32 %v976, 4294901760
    %1512 = vmatpush1.msra.mxu0 %v1511
    %v1513 = vand.u32 %v979, 4294901760
    %1514 = vmatprep.subr.mxu0 %v1513
    %v1515 = vand.u32 %v978, 4294901760
    %1516 = vmatpush1.msra.mxu0 %v1515
    %v1517 = vand.u32 %v981, 4294901760
    %1518 = vmatprep.subr.mxu0 %v1517
    %v1519 = vand.u32 %v980, 4294901760
    %1520 = vmatpush1.msra.mxu0 %v1519
    %v1521 = vand.u32 %v983, 4294901760
    %1522 = vmatprep.subr.mxu0 %v1521
    %v1523 = vand.u32 %v982, 4294901760
    %1524 = vmatpush1.msra.mxu0 %v1523
    %v1525 = vand.u32 %v985, 4294901760
    %1526 = vmatprep.subr.mxu0 %v1525
    %v1527 = vand.u32 %v984, 4294901760
    %1528 = vmatpush1.msra.mxu0 %v1527
    %v1529 = vand.u32 %v987, 4294901760
    %1530 = vmatprep.subr.mxu0 %v1529
    %v1531 = vand.u32 %v986, 4294901760
    %1532 = vmatpush1.msra.mxu0 %v1531
    %v1533 = vand.u32 %v989, 4294901760
    %1534 = vmatprep.subr.mxu0 %v1533
    %v1535 = vand.u32 %v988, 4294901760
    %1536 = vmatpush1.msra.mxu0 %v1535
    %v1537 = vand.u32 %v991, 4294901760
    %1538 = vmatprep.subr.mxu0 %v1537
    %v1539 = vand.u32 %v990, 4294901760
    %1540 = vmatpush1.msra.mxu0 %v1539
    %v1541 = vand.u32 %v993, 4294901760
    %1542 = vmatprep.subr.mxu0 %v1541
    %v1543 = vand.u32 %v992, 4294901760
    %1544 = vmatpush1.msra.mxu0 %v1543
    %v1545 = vand.u32 %v995, 4294901760
    %1546 = vmatprep.subr.mxu0 %v1545
    %v1547 = vand.u32 %v994, 4294901760
    %1548 = vmatpush1.msra.mxu0 %v1547
    %1549 = vmatprep.subr.mxu0 0.0
    %1550 = vmatpush1.msra.mxu0 0.0
    %1551 = vmatprep.subr.mxu0 0.0
    %1552 = vmatpush1.msra.mxu0 0.0
    %1553 = vmatprep.subr.mxu0 0.0
    %1554 = vmatpush1.msra.mxu0 0.0
    %1555 = vmatprep.subr.mxu0 0.0
    %1556 = vmatpush1.msra.mxu0 0.0
    %1557 = vmatprep.subr.mxu0 0.0
    %1558 = vmatpush1.msra.mxu0 0.0
    %1559 = vmatprep.subr.mxu0 0.0
    %1560 = vmatpush1.msra.mxu0 0.0
    %1561 = vmatprep.subr.mxu0 0.0
    %1562 = vmatpush1.msra.mxu0 0.0
    %1563 = vmatprep.subr.mxu0 0.0
    %1564 = vmatpush1.msra.mxu0 0.0
    %1565 = vmatprep.subr.mxu0 0.0
    %1566 = vmatpush1.msra.mxu0 0.0
    %1567 = vmatprep.subr.mxu0 0.0
    %1568 = vmatpush1.msra.mxu0 0.0
    %1569 = vmatprep.subr.mxu0 0.0
    %1570 = vmatpush1.msra.mxu0 0.0
    %1571 = vmatprep.subr.mxu0 0.0
    %1572 = vmatpush1.msra.mxu0 0.0
    %1573 = vmatprep.subr.mxu0 0.0
    %1574 = vmatpush1.msra.mxu0 0.0
    %1575 = vmatprep.subr.mxu0 0.0
    %1576 = vmatpush1.msra.mxu0 0.0
    %1577 = vmatprep.subr.mxu0 0.0
    %1578 = vmatpush1.msra.mxu0 0.0
    %1579 = vmatprep.subr.mxu0 0.0
    %1580 = vmatpush1.msra.mxu0 0.0
    %1581 = vmatprep.mubr.f32.mxu0 0.0
    %v1582 = vand.u32 %v963, 4294901760
    %v1583 = vsub.f32 %v963, %v1582
    %v1584 = vand.u32 %v1583, 4294901760
    %1585 = vmatmul.mubr.f32.gmra.mrb[0].mxu0 %v1584
    %v1586 = vpop.f32.mrb[0].mxu0
    %v1587 = vadd.f32 %v1481, %v1586
    %v1588 = vpop.f32.mrb[0].mxu0
    %v1589 = vadd.f32 %v1483, %v1588
    %1590 = vdwg.mxu0
    %v1591 = vand.u32 %v965, 4294901760
    %v1592 = vsub.f32 %v965, %v1591
    %v1593 = vand.u32 %v1592, 4294901760
    %1594 = vmatprep.subr.mxu0 %v1593
    %v1595 = vand.u32 %v964, 4294901760
    %v1596 = vsub.f32 %v964, %v1595
    %v1597 = vand.u32 %v1596, 4294901760
    %1598 = vmatpush1.msra.mxu0 %v1597
    %v1599 = vand.u32 %v967, 4294901760
    %v1600 = vsub.f32 %v967, %v1599
    %v1601 = vand.u32 %v1600, 4294901760
    %1602 = vmatprep.subr.mxu0 %v1601
    %v1603 = vand.u32 %v966, 4294901760
    %v1604 = vsub.f32 %v966, %v1603
    %v1605 = vand.u32 %v1604, 4294901760
    %1606 = vmatpush1.msra.mxu0 %v1605
    %v1607 = vand.u32 %v969, 4294901760
    %v1608 = vsub.f32 %v969, %v1607
    %v1609 = vand.u32 %v1608, 4294901760
    %1610 = vmatprep.subr.mxu0 %v1609
    %v1611 = vand.u32 %v968, 4294901760
    %v1612 = vsub.f32 %v968, %v1611
    %v1613 = vand.u32 %v1612, 4294901760
    %1614 = vmatpush1.msra.mxu0 %v1613
    %v1615 = vand.u32 %v971, 4294901760
    %v1616 = vsub.f32 %v971, %v1615
    %v1617 = vand.u32 %v1616, 4294901760
    %1618 = vmatprep.subr.mxu0 %v1617
    %v1619 = vand.u32 %v970, 4294901760
    %v1620 = vsub.f32 %v970, %v1619
    %v1621 = vand.u32 %v1620, 4294901760
    %1622 = vmatpush1.msra.mxu0 %v1621
    %v1623 = vand.u32 %v973, 4294901760
    %v1624 = vsub.f32 %v973, %v1623
    %v1625 = vand.u32 %v1624, 4294901760
    %1626 = vmatprep.subr.mxu0 %v1625
    %v1627 = vand.u32 %v972, 4294901760
    %v1628 = vsub.f32 %v972, %v1627
    %v1629 = vand.u32 %v1628, 4294901760
    %1630 = vmatpush1.msra.mxu0 %v1629
    %v1631 = vand.u32 %v975, 4294901760
    %v1632 = vsub.f32 %v975, %v1631
    %v1633 = vand.u32 %v1632, 4294901760
    %1634 = vmatprep.subr.mxu0 %v1633
    %v1635 = vand.u32 %v974, 4294901760
    %v1636 = vsub.f32 %v974, %v1635
    %v1637 = vand.u32 %v1636, 4294901760
    %1638 = vmatpush1.msra.mxu0 %v1637
    %v1639 = vand.u32 %v977, 4294901760
    %v1640 = vsub.f32 %v977, %v1639
    %v1641 = vand.u32 %v1640, 4294901760
    %1642 = vmatprep.subr.mxu0 %v1641
    %v1643 = vand.u32 %v976, 4294901760
    %v1644 = vsub.f32 %v976, %v1643
    %v1645 = vand.u32 %v1644, 4294901760
    %1646 = vmatpush1.msra.mxu0 %v1645
    %v1647 = vand.u32 %v979, 4294901760
    %v1648 = vsub.f32 %v979, %v1647
    %v1649 = vand.u32 %v1648, 4294901760
    %1650 = vmatprep.subr.mxu0 %v1649
    %v1651 = vand.u32 %v978, 4294901760
    %v1652 = vsub.f32 %v978, %v1651
    %v1653 = vand.u32 %v1652, 4294901760
    %1654 = vmatpush1.msra.mxu0 %v1653
    %v1655 = vand.u32 %v981, 4294901760
    %v1656 = vsub.f32 %v981, %v1655
    %v1657 = vand.u32 %v1656, 4294901760
    %1658 = vmatprep.subr.mxu0 %v1657
    %v1659 = vand.u32 %v980, 4294901760
    %v1660 = vsub.f32 %v980, %v1659
    %v1661 = vand.u32 %v1660, 4294901760
    %1662 = vmatpush1.msra.mxu0 %v1661
    %v1663 = vand.u32 %v983, 4294901760
    %v1664 = vsub.f32 %v983, %v1663
    %v1665 = vand.u32 %v1664, 4294901760
    %1666 = vmatprep.subr.mxu0 %v1665
    %v1667 = vand.u32 %v982, 4294901760
    %v1668 = vsub.f32 %v982, %v1667
    %v1669 = vand.u32 %v1668, 4294901760
    %1670 = vmatpush1.msra.mxu0 %v1669
    %v1671 = vand.u32 %v985, 4294901760
    %v1672 = vsub.f32 %v985, %v1671
    %v1673 = vand.u32 %v1672, 4294901760
    %1674 = vmatprep.subr.mxu0 %v1673
    %v1675 = vand.u32 %v984, 4294901760
    %v1676 = vsub.f32 %v984, %v1675
    %v1677 = vand.u32 %v1676, 4294901760
    %1678 = vmatpush1.msra.mxu0 %v1677
    %v1679 = vand.u32 %v987, 4294901760
    %v1680 = vsub.f32 %v987, %v1679
    %v1681 = vand.u32 %v1680, 4294901760
    %1682 = vmatprep.subr.mxu0 %v1681
    %v1683 = vand.u32 %v986, 4294901760
    %v1684 = vsub.f32 %v986, %v1683
    %v1685 = vand.u32 %v1684, 4294901760
    %1686 = vmatpush1.msra.mxu0 %v1685
    %v1687 = vand.u32 %v989, 4294901760
    %v1688 = vsub.f32 %v989, %v1687
    %v1689 = vand.u32 %v1688, 4294901760
    %1690 = vmatprep.subr.mxu0 %v1689
    %v1691 = vand.u32 %v988, 4294901760
    %v1692 = vsub.f32 %v988, %v1691
    %v1693 = vand.u32 %v1692, 4294901760
    %1694 = vmatpush1.msra.mxu0 %v1693
    %v1695 = vand.u32 %v991, 4294901760
    %v1696 = vsub.f32 %v991, %v1695
    %v1697 = vand.u32 %v1696, 4294901760
    %1698 = vmatprep.subr.mxu0 %v1697
    %v1699 = vand.u32 %v990, 4294901760
    %v1700 = vsub.f32 %v990, %v1699
    %v1701 = vand.u32 %v1700, 4294901760
    %1702 = vmatpush1.msra.mxu0 %v1701
    %v1703 = vand.u32 %v993, 4294901760
    %v1704 = vsub.f32 %v993, %v1703
    %v1705 = vand.u32 %v1704, 4294901760
    %1706 = vmatprep.subr.mxu0 %v1705
    %v1707 = vand.u32 %v992, 4294901760
    %v1708 = vsub.f32 %v992, %v1707
    %v1709 = vand.u32 %v1708, 4294901760
    %1710 = vmatpush1.msra.mxu0 %v1709
    %v1711 = vand.u32 %v995, 4294901760
    %v1712 = vsub.f32 %v995, %v1711
    %v1713 = vand.u32 %v1712, 4294901760
    %1714 = vmatprep.subr.mxu0 %v1713
    %v1715 = vand.u32 %v994, 4294901760
    %v1716 = vsub.f32 %v994, %v1715
    %v1717 = vand.u32 %v1716, 4294901760
    %1718 = vmatpush1.msra.mxu0 %v1717
    %1719 = vmatprep.subr.mxu0 0.0
    %1720 = vmatpush1.msra.mxu0 0.0
    %1721 = vmatprep.subr.mxu0 0.0
    %1722 = vmatpush1.msra.mxu0 0.0
    %1723 = vmatprep.subr.mxu0 0.0
    %1724 = vmatpush1.msra.mxu0 0.0
    %1725 = vmatprep.subr.mxu0 0.0
    %1726 = vmatpush1.msra.mxu0 0.0
    %1727 = vmatprep.subr.mxu0 0.0
    %1728 = vmatpush1.msra.mxu0 0.0
    %1729 = vmatprep.subr.mxu0 0.0
    %1730 = vmatpush1.msra.mxu0 0.0
    %1731 = vmatprep.subr.mxu0 0.0
    %1732 = vmatpush1.msra.mxu0 0.0
    %1733 = vmatprep.subr.mxu0 0.0
    %1734 = vmatpush1.msra.mxu0 0.0
    %1735 = vmatprep.subr.mxu0 0.0
    %1736 = vmatpush1.msra.mxu0 0.0
    %1737 = vmatprep.subr.mxu0 0.0
    %1738 = vmatpush1.msra.mxu0 0.0
    %1739 = vmatprep.subr.mxu0 0.0
    %1740 = vmatpush1.msra.mxu0 0.0
    %1741 = vmatprep.subr.mxu0 0.0
    %1742 = vmatpush1.msra.mxu0 0.0
    %1743 = vmatprep.subr.mxu0 0.0
    %1744 = vmatpush1.msra.mxu0 0.0
    %1745 = vmatprep.subr.mxu0 0.0
    %1746 = vmatpush1.msra.mxu0 0.0
    %1747 = vmatprep.subr.mxu0 0.0
    %1748 = vmatpush1.msra.mxu0 0.0
    %1749 = vmatprep.subr.mxu0 0.0
    %1750 = vmatpush1.msra.mxu0 0.0
    %1751 = vmatprep.mubr.f32.mxu0 0.0
    %v1752 = vand.u32 %v963, 4294901760
    %1753 = vmatmul.mubr.f32.gmra.mrb[0].mxu0 %v1752
    %v1754 = vpop.f32.mrb[0].mxu0
    %v1755 = vadd.f32 %v1587, %v1754
    %v1756 = vpop.f32.mrb[0].mxu0
    %v1757 = vadd.f32 %v1589, %v1756
    %1758 = vdwg.mxu0
    %v1759 = vand.u32 %v965, 4294901760
    %1760 = vmatprep.subr.mxu0 %v1759
    %v1761 = vand.u32 %v964, 4294901760
    %1762 = vmatpush1.msra.mxu0 %v1761
    %v1763 = vand.u32 %v967, 4294901760
    %1764 = vmatprep.subr.mxu0 %v1763
    %v1765 = vand.u32 %v966, 4294901760
    %1766 = vmatpush1.msra.mxu0 %v1765
    %v1767 = vand.u32 %v969, 4294901760
    %1768 = vmatprep.subr.mxu0 %v1767
    %v1769 = vand.u32 %v968, 4294901760
    %1770 = vmatpush1.msra.mxu0 %v1769
    %v1771 = vand.u32 %v971, 4294901760
    %1772 = vmatprep.subr.mxu0 %v1771
    %v1773 = vand.u32 %v970, 4294901760
    %1774 = vmatpush1.msra.mxu0 %v1773
    %v1775 = vand.u32 %v973, 4294901760
    %1776 = vmatprep.subr.mxu0 %v1775
    %v1777 = vand.u32 %v972, 4294901760
    %1778 = vmatpush1.msra.mxu0 %v1777
    %v1779 = vand.u32 %v975, 4294901760
    %1780 = vmatprep.subr.mxu0 %v1779
    %v1781 = vand.u32 %v974, 4294901760
    %1782 = vmatpush1.msra.mxu0 %v1781
    %v1783 = vand.u32 %v977, 4294901760
    %1784 = vmatprep.subr.mxu0 %v1783
    %v1785 = vand.u32 %v976, 4294901760
    %1786 = vmatpush1.msra.mxu0 %v1785
    %v1787 = vand.u32 %v979, 4294901760
    %1788 = vmatprep.subr.mxu0 %v1787
    %v1789 = vand.u32 %v978, 4294901760
    %1790 = vmatpush1.msra.mxu0 %v1789
    %v1791 = vand.u32 %v981, 4294901760
    %1792 = vmatprep.subr.mxu0 %v1791
    %v1793 = vand.u32 %v980, 4294901760
    %1794 = vmatpush1.msra.mxu0 %v1793
    %v1795 = vand.u32 %v983, 4294901760
    %1796 = vmatprep.subr.mxu0 %v1795
    %v1797 = vand.u32 %v982, 4294901760
    %1798 = vmatpush1.msra.mxu0 %v1797
    %v1799 = vand.u32 %v985, 4294901760
    %1800 = vmatprep.subr.mxu0 %v1799
    %v1801 = vand.u32 %v984, 4294901760
    %1802 = vmatpush1.msra.mxu0 %v1801
    %v1803 = vand.u32 %v987, 4294901760
    %1804 = vmatprep.subr.mxu0 %v1803
    %v1805 = vand.u32 %v986, 4294901760
    %1806 = vmatpush1.msra.mxu0 %v1805
    %v1807 = vand.u32 %v989, 4294901760
    %1808 = vmatprep.subr.mxu0 %v1807
    %v1809 = vand.u32 %v988, 4294901760
    %1810 = vmatpush1.msra.mxu0 %v1809
    %v1811 = vand.u32 %v991, 4294901760
    %1812 = vmatprep.subr.mxu0 %v1811
    %v1813 = vand.u32 %v990, 4294901760
    %1814 = vmatpush1.msra.mxu0 %v1813
    %v1815 = vand.u32 %v993, 4294901760
    %1816 = vmatprep.subr.mxu0 %v1815
    %v1817 = vand.u32 %v992, 4294901760
    %1818 = vmatpush1.msra.mxu0 %v1817
    %v1819 = vand.u32 %v995, 4294901760
    %1820 = vmatprep.subr.mxu0 %v1819
    %v1821 = vand.u32 %v994, 4294901760
    %1822 = vmatpush1.msra.mxu0 %v1821
    %1823 = vmatprep.subr.mxu0 0.0
    %1824 = vmatpush1.msra.mxu0 0.0
    %1825 = vmatprep.subr.mxu0 0.0
    %1826 = vmatpush1.msra.mxu0 0.0
    %1827 = vmatprep.subr.mxu0 0.0
    %1828 = vmatpush1.msra.mxu0 0.0
    %1829 = vmatprep.subr.mxu0 0.0
    %1830 = vmatpush1.msra.mxu0 0.0
    %1831 = vmatprep.subr.mxu0 0.0
    %1832 = vmatpush1.msra.mxu0 0.0
    %1833 = vmatprep.subr.mxu0 0.0
    %1834 = vmatpush1.msra.mxu0 0.0
    %1835 = vmatprep.subr.mxu0 0.0
    %1836 = vmatpush1.msra.mxu0 0.0
    %1837 = vmatprep.subr.mxu0 0.0
    %1838 = vmatpush1.msra.mxu0 0.0
    %1839 = vmatprep.subr.mxu0 0.0
    %1840 = vmatpush1.msra.mxu0 0.0
    %1841 = vmatprep.subr.mxu0 0.0
    %1842 = vmatpush1.msra.mxu0 0.0
    %1843 = vmatprep.subr.mxu0 0.0
    %1844 = vmatpush1.msra.mxu0 0.0
    %1845 = vmatprep.subr.mxu0 0.0
    %1846 = vmatpush1.msra.mxu0 0.0
    %1847 = vmatprep.subr.mxu0 0.0
    %1848 = vmatpush1.msra.mxu0 0.0
    %1849 = vmatprep.subr.mxu0 0.0
    %1850 = vmatpush1.msra.mxu0 0.0
    %1851 = vmatprep.subr.mxu0 0.0
    %1852 = vmatpush1.msra.mxu0 0.0
    %1853 = vmatprep.subr.mxu0 0.0
    %1854 = vmatpush1.msra.mxu0 0.0
    %1855 = vmatprep.mubr.f32.mxu0 0.0
    %v1856 = vand.u32 %v963, 4294901760
    %1857 = vmatmul.mubr.f32.gmra.mrb[0].mxu0 %v1856
    %v1858 = vpop.f32.mrb[0].mxu0
    %v1859 = vadd.f32 %v1755, %v1858
    %v1860 = vpop.f32.mrb[0].mxu0
    %v1861 = vadd.f32 %v1757, %v1860
    %1862 = vdwg.mxu0
    %v1863 = vmul.f32 %v1859, 0.5
    %v1864 = vmul.f32 %v1861, 0.5
    %v1865 = vtanh.pop %v1863
    %v1866 = vtanh.pop %v1864
    %v1867 = vmul.f32 %v1865, 0.5
    %v1868 = vmul.f32 %v1866, 0.5
    %v1869 = vadd.f32 %v1867, 0.5
    %v1870 = vadd.f32 %v1868, 0.5
    %1871 = vst [vmem:[#allocation8] sm:$0xff] %v1869
    %1872 = vst [vmem:[#allocation8 + $0x8] sm:$0xff] %v1870
    // Predicated region
    $region34: #{tpu_custom_call.1} parent=1 // pred_check
      _
    $region35: #{tpu_custom_call.1} parent=1 // pred_check_branch
      %1874 = sbr.rel (0) target = $region37
    $region36: #{tpu_custom_call.1} parent=1 // pred_region
      %s1876 = ssub.s32 256, 256
      %1877 = vsyncadd [#allocation4], %s1876
      %s1879 = sshll.u32 [#allocation8], 4
      %s1880 = int_to_ptr.vmem [resolvable:$true] %s1879
      %1882 = dma.vmem_to_hbm [thread:$0]  %s1880, 256, %s5, [#allocation4]
    $region37: #{tpu_custom_call.1} parent=1 // pred_fallthru
      _
    // Predicated region
    $region38: #{tpu_custom_call.1} parent=1 // pred_check
      _
    $region39: #{tpu_custom_call.1} parent=1 // pred_check_branch
      %1884 = sbr.rel (0) target = $region41
    $region40: #{tpu_custom_call.1} parent=1 // pred_region
      %1885 = dma.done [#allocation4], 256
    $region41: #{tpu_custom_call.1} parent=1 // pred_fallthru
      _
    %1886 = vsyncpa [#allocation3], 1
    %1887 = vsyncpa [#allocation6], 1
    %1888 = vsyncpa [#allocation4], 1

</llo_original>
